<compile_context>
chip_gen: v7x
topology: tpu7x:2x2x1
jax: 0.10.0
libtpu: 0.0.40
codegen_flags: <defaults>
</compile_context>

<pallas_src>
import functools
import math

import jax
import jax.numpy as jnp
from jax import lax
from jax.experimental import pallas as pl
from jax.experimental.pallas import tpu as pltpu

LANE = 128  # TPU lane-tile width


# --------------------------------------------------------------------------
# Fused kernel: multi-headed cross attention + LSTM + output Linear
# --------------------------------------------------------------------------
def _decoder_kernel(x_ref, ce_ref, mask_ref,
                    w1_ref, b1_ref, w2_ref, b2_ref,
                    whh_ref, wl_ref, bl_ref,
                    out_ref, ctx_ref, h_all_sc,
                    *, n_heads, hidden_size, head_pad, ctx_pad):
    B, Sq, Dq = x_ref.shape
    Sk = ce_ref.shape[1]
    H = hidden_size
    P = head_pad
    f32 = jnp.float32
    bf16 = jnp.bfloat16

    nq = B * Sq
    nk = B * Sk

    # ---- Fused Q/K/V projection: a single MXU matmul for all heads and all of
    # Q, K, V.  Query rows (features) and key/value rows (caption_emb) are
    # stacked so everything rides in one push.
    x2 = x_ref[...].reshape(nq, Dq)
    c2 = ce_ref[...].reshape(nk, Dq)
    stacked = jnp.concatenate([x2, c2], axis=0)                 # (nq+nk, Dq) bf16
    proj = (jnp.dot(stacked, w1_ref[...], preferred_element_type=f32)
            + b1_ref[...])                                      # (nq+nk, 3*nh*P)

    keep = mask_ref[...] > 0.0                                  # hoisted
    neg = jnp.float32(-1e30)                                    # finite: no NaN on empty rows

    # ---- Per-head attention.  Each head occupies its own 128-lane tile, so
    # every slice below is lane-tile aligned; the head concat is replaced by
    # accumulating each head straight through the fused [wo | wo@W_ih] weight.
    combined = None
    for h in range(n_heads):                                    # static, n_heads small
        base = 3 * P * h
        q_h = proj[:nq, base:base + P].astype(bf16).reshape(B, Sq, P)
        k_h = proj[nq:, base + P:base + 2 * P].astype(bf16).reshape(B, Sk, P)
        v_h = proj[nq:, base + 2 * P:base + 3 * P].astype(bf16).reshape(B, Sk, P)
        # 1/sqrt(d_k) is already folded into wq/bq wrapper-side.
        s = jnp.einsum("bqd,bkd->bqk", q_h, k_h, preferred_element_type=f32)
        s = jnp.where(keep, s, neg)                             # masked_fill(mask==0, -inf)
        p = jnp.exp(s - jnp.max(s, axis=-1, keepdims=True))
        p = p * pl.reciprocal(jnp.sum(p, axis=-1, keepdims=True), approx=True)
        o_h = jnp.einsum("bqk,bkd->bqd", p.astype(bf16), v_h,
                         preferred_element_type=f32)            # (B, Sq, P)
        part = jnp.dot(o_h.reshape(nq, P).astype(bf16),
                       w2_ref[h * P:(h + 1) * P, :],
                       preferred_element_type=f32)              # (nq, ctx_pad + 4H)
        combined = part if combined is None else combined + part
    combined = combined + b2_ref[...]

    # Lanes [0, Dq) of `combined` hold features_context; lanes [ctx_pad, +4H)
    # already hold ctx @ W_ih + b thanks to the wo ⊗ W_ih fusion, so the LSTM
    # recurrence starts without waiting on a second matmul.
    ctx_ref[...] = combined[:, :Dq].reshape(B, Sq, Dq)
    gx = combined[:, ctx_pad:].reshape(B, Sq, 4 * H)            # gate order: i, f, g, o

    # ---- LSTM recurrence (h0 = c0 = 0), T = Sq, fully unrolled.
    whh = whh_ref[...]                                          # bf16, loaded once
    h_t = jnp.zeros((B, H), f32)
    c_t = jnp.zeros((B, H), f32)
    for t in range(Sq):
        gates = gx[:, t, :] + jnp.dot(h_t.astype(bf16), whh,
                                      preferred_element_type=f32)
        sg = jax.nn.sigmoid(gates)                              # one full-width EUP pass
        g_g = jnp.tanh(gates[:, 2 * H:3 * H])                   # tanh only on the cell gate
        i_g = sg[:, 0 * H:1 * H]
        f_g = sg[:, 1 * H:2 * H]
        o_g = sg[:, 3 * H:4 * H]
        c_t = f_g * c_t + i_g * g_g
        h_t = o_g * jnp.tanh(c_t)
        h_all_sc[:, t, :] = h_t                                 # stash for post-loop Linear

    # ---- Output Linear: one batched matmul + one bulk store after the loop.
    hall2 = h_all_sc[...].reshape(B * Sq, H).astype(bf16)
    out2 = (jnp.dot(hall2, wl_ref[...], preferred_element_type=f32)
            + bl_ref[...])
    out_ref[...] = out2.reshape(B, Sq, out_ref.shape[-1])


# --------------------------------------------------------------------------
# Host-side weight fusion / padding
# --------------------------------------------------------------------------
def _fuse_params(params, n_heads, head_pad, ctx_pad):
    pa = params["att"]
    pr = params["lstm"]
    Dq, Dm = pa["wq"].shape
    dk = Dm // n_heads
    scale = 1.0 / math.sqrt(dk)
    bf16 = jnp.bfloat16

    def pad_cols(w, width):
        return jnp.pad(w, ((0, 0), (0, width - w.shape[1])))

    # 1/sqrt(d_k) folded into the query projection.
    wq = pa["wq"] * scale
    bq = pa["bq"] * scale

    # W1 layout per head: [q(head_pad) | k(head_pad) | v(head_pad)], zero-padded
    # so every head block is a whole 128-lane tile.
    w1_blocks, b1_blocks = [], []
    for h in range(n_heads):
        sl = slice(h * dk, (h + 1) * dk)
        w1_blocks += [pad_cols(wq[:, sl], head_pad),
                      pad_cols(pa["wk"][:, sl], head_pad),
                      pad_cols(pa["wv"][:, sl], head_pad)]
        b1_blocks += [pad_cols(bq[:, sl], head_pad),
                      pad_cols(pa["bk"][:, sl], head_pad),
                      pad_cols(pa["bv"][:, sl], head_pad)]
    w1 = jnp.concatenate(w1_blocks, axis=1)                 # (Dq, 3*nh*head_pad)
    b1 = jnp.concatenate(b1_blocks, axis=1)

    # W2 = [wo_pad | wo @ W_ih]; rows split per head and zero-padded to head_pad
    # rows so the per-head accumulation consumes the padded o_h directly.
    wo_ih = pa["wo"] @ pr["wih"]                            # (Dm, 4H), f32
    w2_full = jnp.concatenate([pad_cols(pa["wo"], ctx_pad), wo_ih], axis=1)
    w2_blocks = []
    for h in range(n_heads):
        blk = w2_full[h * dk:(h + 1) * dk, :]
        w2_blocks.append(jnp.pad(blk, ((0, head_pad - dk), (0, 0))))
    w2 = jnp.concatenate(w2_blocks, axis=0)                 # (nh*head_pad, ctx_pad+4H)
    b2 = jnp.concatenate([pad_cols(pa["bo"], ctx_pad),
                          pa["bo"] @ pr["wih"] + pr["b"]], axis=1)

    return dict(
        w1=w1.astype(bf16), b1=b1.astype(jnp.float32),
        w2=w2.astype(bf16), b2=b2.astype(jnp.float32),
        whh=pr["whh"].astype(bf16),
        wl=pr["wl"].astype(bf16), bl=pr["bl"].astype(jnp.float32),
    )


def decoder_forward(features, caption_emb, c_mask, params, n_heads,
                    hidden_size, out_size, batch_blocks=1):
    B, Sq, Dq = features.shape
    Sk = caption_emb.shape[1]
    Dm = params["att"]["wq"].shape[1]
    assert Dm % n_heads == 0
    assert B % batch_blocks == 0
    dk = Dm // n_heads
    head_pad = ((dk + LANE - 1) // LANE) * LANE
    ctx_pad = ((Dq + LANE - 1) // LANE) * LANE
    gate_w = 4 * hidden_size
    Bb = B // batch_blocks

    fused = _fuse_params(params, n_heads, head_pad, ctx_pad)

    kernel = functools.partial(_decoder_kernel, n_heads=n_heads,
                               hidden_size=hidden_size, head_pad=head_pad,
                               ctx_pad=ctx_pad)

    def batch_spec(shape):
        return pl.BlockSpec((Bb,) + shape, lambda i: (i,) + (0,) * len(shape))

    def const_spec(shape):
        return pl.BlockSpec(shape, lambda i: (0,) * len(shape))

    outputs, features_context = pl.pallas_call(
        kernel,
        out_shape=(jax.ShapeDtypeStruct((B, Sq, out_size), jnp.float32),
                   jax.ShapeDtypeStruct((B, Sq, Dq), jnp.float32)),
        # batch_blocks=1 (fold batch, single grid step) on v5e/v6e; use 2 on
        # v7x so both TensorCores get work.
        grid=(batch_blocks,),
        in_specs=[
            batch_spec((Sq, Dq)),                            # features (bf16)
            batch_spec((Sk, Dq)),                            # caption_emb (bf16)
            batch_spec((Sq, Sk)),                            # C_mask
            const_spec((Dq, 3 * n_heads * head_pad)),        # W1  (fused QKV)
            const_spec((1, 3 * n_heads * head_pad)),         # b1
            const_spec((n_heads * head_pad, ctx_pad + gate_w)),  # W2 (wo | wo@W_ih)
            const_spec((1, ctx_pad + gate_w)),               # b2
            const_spec((hidden_size, gate_w)),               # W_hh^T
            const_spec((hidden_size, out_size)),             # Linear W^T
            const_spec((1, out_size)),                       # Linear bias
        ],
        out_specs=[batch_spec((Sq, out_size)), batch_spec((Sq, Dq))],
        scratch_shapes=[pltpu.VMEM((Bb, Sq, hidden_size), jnp.float32)],
        compiler_params=pltpu.CompilerParams(
            dimension_semantics=("parallel",)),
    )(features.astype(jnp.bfloat16), caption_emb.astype(jnp.bfloat16), c_mask,
      fused["w1"], fused["b1"], fused["w2"], fused["b2"],
      fused["whh"], fused["wl"], fused["bl"])
    return outputs, features_context


# --------------------------------------------------------------------------
# Plain-JAX (f32) reference for correctness checking
# --------------------------------------------------------------------------
def reference_forward(features, caption_emb, c_mask, params, n_heads,
                      hidden_size, out_size):
    pa = params["att"]
    q = features @ pa["wq"] + pa["bq"]
    k = caption_emb @ pa["wk"] + pa["bk"]
    v = caption_emb @ pa["wv"] + pa["bv"]
    B, Sq, Dm = q.shape
    d_k = Dm // n_heads
    qh = q.reshape(B, Sq, n_heads, d_k).transpose(0, 2, 1, 3)
    kh = k.reshape(B, -1, n_heads, d_k).transpose(0, 2, 1, 3)
    vh = v.reshape(B, -1, n_heads, d_k).transpose(0, 2, 1, 3)
    s = jnp.einsum("bhqd,bhkd->bhqk", qh, kh) / math.sqrt(d_k)
    s = jnp.where(c_mask[:, None] > 0, s, -jnp.inf)
    a = jax.nn.softmax(s, axis=-1)
    o = jnp.einsum("bhqk,bhkd->bhqd", a, vh).transpose(0, 2, 1, 3).reshape(B, Sq, Dm)
    att = o @ pa["wo"] + pa["bo"]

    pr = params["lstm"]

    def cell(carry, x_t):
        h, c = carry
        gates = x_t @ pr["wih"] + h @ pr["whh"] + pr["b"]
        i_g = jax.nn.sigmoid(gates[:, 0 * hidden_size:1 * hidden_size])
        f_g = jax.nn.sigmoid(gates[:, 1 * hidden_size:2 * hidden_size])
        g_g = jnp.tanh(gates[:, 2 * hidden_size:3 * hidden_size])
        o_g = jax.nn.sigmoid(gates[:, 3 * hidden_size:4 * hidden_size])
        c = f_g * c + i_g * g_g
        h = o_g * jnp.tanh(c)
        return (h, c), h

    x_tm = jnp.transpose(att, (1, 0, 2))
    h0 = jnp.zeros((B, hidden_size), jnp.float32)
    c0 = jnp.zeros((B, hidden_size), jnp.float32)
    _, hs = lax.scan(cell, (h0, c0), x_tm)
    lstm_out = jnp.transpose(hs, (1, 0, 2))
    outputs = lstm_out @ pr["wl"] + pr["bl"]
    return outputs, att


# --------------------------------------------------------------------------
if __name__ == "__main__":
    # Small, shape-consistent configuration:
    #   embed_size == cfg.d_model_caps == cfg.d_model == 32 (LSTM consumes the
    #   attention output directly), hidden_size=32, out_size=16, heads=2.
    B, Sq, Sk = 2, 8, 8
    D_CAPS = 32           # embed_size / d_model_caps
    D_MODEL = 32          # cfg.d_model (internal attention width)
    HEADS = 2
    HIDDEN = 32
    OUT = 16

    key = jax.random.PRNGKey(0)
    ks = jax.random.split(key, 16)

    def w(k, shape, scale=0.1):
        return (scale * jax.random.normal(k, shape)).astype(jnp.float32)

    params = {
        "att": {
            "wq": w(ks[0], (D_CAPS, D_MODEL)), "bq": w(ks[1], (1, D_MODEL)),
            "wk": w(ks[2], (D_CAPS, D_MODEL)), "bk": w(ks[3], (1, D_MODEL)),
            "wv": w(ks[4], (D_CAPS, D_MODEL)), "bv": w(ks[5], (1, D_MODEL)),
            "wo": w(ks[6], (D_MODEL, D_CAPS)), "bo": w(ks[7], (1, D_CAPS)),
        },
        "lstm": {
            "wih": w(ks[8], (D_CAPS, 4 * HIDDEN)),     # W_ih^T (gate order i,f,g,o)
            "whh": w(ks[9], (HIDDEN, 4 * HIDDEN)),     # W_hh^T
            "b":   w(ks[10], (1, 4 * HIDDEN)),         # b_ih + b_hh (combined)
            "wl":  w(ks[11], (HIDDEN, OUT)),           # final Linear W^T
            "bl":  w(ks[12], (1, OUT)),
        },
    }

    features = w(ks[13], (B, Sq, D_CAPS), scale=1.0)       # decoder query stream
    caption_emb = w(ks[14], (B, Sk, D_CAPS), scale=1.0)    # caption embeddings (K/V)

    # masks['C_mask']: 1 = valid caption token, 0 = padding (last 2 keys padded)
    valid = (jnp.arange(Sk) < Sk - 2).astype(jnp.float32)
    c_mask = jnp.broadcast_to(valid[None, None, :], (B, Sq, Sk)).astype(jnp.float32)

    outputs, features_context = decoder_forward(
        features, caption_emb, c_mask, params, HEADS, HIDDEN, OUT)
    jax.block_until_ready((outputs, features_context))

    ref_out, ref_ctx = reference_forward(
        features, caption_emb, c_mask, params, HEADS, HIDDEN, OUT)

    assert outputs.shape == (B, Sq, OUT)
    assert features_context.shape == (B, Sq, D_CAPS)
    # Tolerance accounts for bf16 matmul operands, the host-side weight fusions
    # (fp32 associativity differences) and pl.reciprocal(approx=True).
    assert jnp.allclose(features_context, ref_ctx, atol=2e-2, rtol=2e-2)
    assert jnp.allclose(outputs, ref_out, atol=2e-2, rtol=2e-2)

    print("KERNEL_OK")
</pallas_src>

<mosaic_0001>
module attributes {stable_mosaic.version = 11 : i64} {
  func.func @_decoder_kernel(%arg0: i32, %arg1: memref<2x8x32xbf16, #tpu.memory_space<vmem>>, %arg2: memref<2x8x32xbf16, #tpu.memory_space<vmem>>, %arg3: memref<2x8x8xf32, #tpu.memory_space<vmem>>, %arg4: memref<32x768xbf16, #tpu.memory_space<vmem>>, %arg5: memref<1x768xf32, #tpu.memory_space<vmem>>, %arg6: memref<256x256xbf16, #tpu.memory_space<vmem>>, %arg7: memref<1x256xf32, #tpu.memory_space<vmem>>, %arg8: memref<32x128xbf16, #tpu.memory_space<vmem>>, %arg9: memref<32x16xbf16, #tpu.memory_space<vmem>>, %arg10: memref<1x16xf32, #tpu.memory_space<vmem>>, %arg11: memref<2x8x16xf32, #tpu.memory_space<vmem>>, %arg12: memref<2x8x32xf32, #tpu.memory_space<vmem>>, %arg13: memref<2x8x32xf32, #tpu.memory_space<vmem>>) attributes {dimension_semantics = [#tpu.dimension_semantics<parallel>], iteration_bounds = array<i64: 1>, scalar_prefetch = 0 : i64, scratch_operands = 1 : i64, tpu.core_type = #tpu.core_type<tc>, window_params = [{transform_indices = @transform_0, window_bounds = array<i64: 2, 8, 32>}, {transform_indices = @transform_1, window_bounds = array<i64: 2, 8, 32>}, {transform_indices = @transform_2, window_bounds = array<i64: 2, 8, 8>}, {pipeline_mode = #tpu.pipeline_mode<synchronous>, transform_indices = @transform_3, window_bounds = array<i64: 32, 768>}, {pipeline_mode = #tpu.pipeline_mode<synchronous>, transform_indices = @transform_4, window_bounds = array<i64: 1, 768>}, {pipeline_mode = #tpu.pipeline_mode<synchronous>, transform_indices = @transform_5, window_bounds = array<i64: 256, 256>}, {pipeline_mode = #tpu.pipeline_mode<synchronous>, transform_indices = @transform_6, window_bounds = array<i64: 1, 256>}, {pipeline_mode = #tpu.pipeline_mode<synchronous>, transform_indices = @transform_7, window_bounds = array<i64: 32, 128>}, {pipeline_mode = #tpu.pipeline_mode<synchronous>, transform_indices = @transform_8, window_bounds = array<i64: 32, 16>}, {pipeline_mode = #tpu.pipeline_mode<synchronous>, transform_indices = @transform_9, window_bounds = array<i64: 1, 16>}, {transform_indices = @transform_10, window_bounds = array<i64: 2, 8, 16>}, {transform_indices = @transform_11, window_bounds = array<i64: 2, 8, 32>}]} {
    %c0 = arith.constant 0 : index
    %c0_0 = arith.constant 0 : index
    %c0_1 = arith.constant 0 : index
    %0 = vector.load %arg1[%c0, %c0_0, %c0_1] : memref<2x8x32xbf16, #tpu.memory_space<vmem>>, vector<2x8x32xbf16>
    %1 = vector.shape_cast %0 : vector<2x8x32xbf16> to vector<16x32xbf16>
    %c0_2 = arith.constant 0 : index
    %c0_3 = arith.constant 0 : index
    %c0_4 = arith.constant 0 : index
    %2 = vector.load %arg2[%c0_2, %c0_3, %c0_4] : memref<2x8x32xbf16, #tpu.memory_space<vmem>>, vector<2x8x32xbf16>
    %3 = vector.shape_cast %2 : vector<2x8x32xbf16> to vector<16x32xbf16>
    %4 = tpu.concatenate %1, %3 in 0 : vector<16x32xbf16>, vector<16x32xbf16> -> vector<32x32xbf16>
    %c0_5 = arith.constant 0 : index
    %c0_6 = arith.constant 0 : index
    %5 = vector.load %arg4[%c0_5, %c0_6] : memref<32x768xbf16, #tpu.memory_space<vmem>>, vector<32x768xbf16>
    %cst = arith.constant dense<0.000000e+00> : vector<32x768xf32>
    %6 = tpu.matmul %4, %5, %cst {dimension_numbers = #tpu.dot_dimension_numbers<[1], [0], [0], [1], [0, 0, 1, 1], [], []>} : vector<32x32xbf16>, vector<32x768xbf16>, vector<32x768xf32> -> vector<32x768xf32>
    %c0_7 = arith.constant 0 : index
    %c0_8 = arith.constant 0 : index
    %7 = vector.load %arg5[%c0_7, %c0_8] : memref<1x768xf32, #tpu.memory_space<vmem>>, vector<1x768xf32>
    %8 = vector.broadcast %7 : vector<1x768xf32> to vector<32x768xf32>
    %9 = arith.addf %6, %8 : vector<32x768xf32>
    %c0_9 = arith.constant 0 : index
    %c0_10 = arith.constant 0 : index
    %c0_11 = arith.constant 0 : index
    %10 = vector.load %arg3[%c0_9, %c0_10, %c0_11] : memref<2x8x8xf32, #tpu.memory_space<vmem>>, vector<2x8x8xf32>
    %cst_12 = arith.constant 0.000000e+00 : f32
    %11 = vector.broadcast %cst_12 : f32 to vector<2x8x8xf32>
    %12 = arith.cmpf ogt, %10, %11 : vector<2x8x8xf32>
    %13 = vector.extract_strided_slice %9 {offsets = [0, 0], sizes = [16, 128], strides = [1, 1]} : vector<32x768xf32> to vector<16x128xf32>
    %14 = arith.truncf %13 : vector<16x128xf32> to vector<16x128xbf16>
    %15 = vector.shape_cast %14 : vector<16x128xbf16> to vector<2x8x128xbf16>
    %16 = vector.extract_strided_slice %9 {offsets = [16, 128], sizes = [16, 128], strides = [1, 1]} : vector<32x768xf32> to vector<16x128xf32>
    %17 = arith.truncf %16 : vector<16x128xf32> to vector<16x128xbf16>
    %18 = vector.shape_cast %17 : vector<16x128xbf16> to vector<2x8x128xbf16>
    %19 = vector.extract_strided_slice %9 {offsets = [16, 256], sizes = [16, 128], strides = [1, 1]} : vector<32x768xf32> to vector<16x128xf32>
    %20 = arith.truncf %19 : vector<16x128xf32> to vector<16x128xbf16>
    %21 = vector.shape_cast %20 : vector<16x128xbf16> to vector<2x8x128xbf16>
    "tpu.trace_start"() <{level = 10 : i32, message = "bqd,bkd->bqk"}> : () -> ()
    %cst_13 = arith.constant dense<0.000000e+00> : vector<2x8x8xf32>
    %22 = tpu.matmul %15, %18, %cst_13 {dimension_numbers = #tpu.dot_dimension_numbers<[2], [2], [1], [1], [0, 0, 0, 1, 1, 1], [0], [0]>} : vector<2x8x128xbf16>, vector<2x8x128xbf16>, vector<2x8x8xf32> -> vector<2x8x8xf32>
    %cst_14 = arith.constant -1.000000e+30 : f32
    "tpu.trace_stop"() : () -> ()
    %23 = vector.broadcast %cst_14 : f32 to vector<2x8x8xf32>
    %24 = arith.select %12, %22, %23 : vector<2x8x8xi1>, vector<2x8x8xf32>
    %cst_15 = arith.constant dense<0xFF800000> : vector<2x8xf32>
    %25 = vector.multi_reduction <maximumf>, %24, %cst_15 [2] : vector<2x8x8xf32> to vector<2x8xf32>
    %26 = vector.shape_cast %25 : vector<2x8xf32> to vector<2x8x1xf32>
    %27 = vector.broadcast %26 : vector<2x8x1xf32> to vector<2x8x8xf32>
    %28 = arith.subf %24, %27 : vector<2x8x8xf32>
    %29 = math.exp %28 : vector<2x8x8xf32>
    %cst_16 = arith.constant dense<0.000000e+00> : vector<2x8xf32>
    %30 = vector.multi_reduction <add>, %29, %cst_16 [2] : vector<2x8x8xf32> to vector<2x8xf32>
    %31 = vector.shape_cast %30 : vector<2x8xf32> to vector<2x8x1xf32>
    %32 = tpu.reciprocal %31 {approx = true} : vector<2x8x1xf32> -> vector<2x8x1xf32>
    %33 = vector.broadcast %32 : vector<2x8x1xf32> to vector<2x8x8xf32>
    %34 = arith.mulf %29, %33 : vector<2x8x8xf32>
    %35 = arith.truncf %34 : vector<2x8x8xf32> to vector<2x8x8xbf16>
    "tpu.trace_start"() <{level = 10 : i32, message = "bqk,bkd->bqd"}> : () -> ()
    %cst_17 = arith.constant dense<0.000000e+00> : vector<2x8x128xf32>
    %36 = tpu.matmul %35, %21, %cst_17 {dimension_numbers = #tpu.dot_dimension_numbers<[2], [1], [1], [2], [0, 0, 0, 1, 1, 2], [0], [0]>} : vector<2x8x8xbf16>, vector<2x8x128xbf16>, vector<2x8x128xf32> -> vector<2x8x128xf32>
    "tpu.trace_stop"() : () -> ()
    %37 = vector.shape_cast %36 : vector<2x8x128xf32> to vector<16x128xf32>
    %38 = arith.truncf %37 : vector<16x128xf32> to vector<16x128xbf16>
    %c0_18 = arith.constant 0 : index
    %c0_19 = arith.constant 0 : index
    %39 = vector.load %arg6[%c0_18, %c0_19] : memref<256x256xbf16, #tpu.memory_space<vmem>>, vector<128x256xbf16>
    %cst_20 = arith.constant dense<0.000000e+00> : vector<16x256xf32>
    %40 = tpu.matmul %38, %39, %cst_20 {dimension_numbers = #tpu.dot_dimension_numbers<[1], [0], [0], [1], [0, 0, 1, 1], [], []>} : vector<16x128xbf16>, vector<128x256xbf16>, vector<16x256xf32> -> vector<16x256xf32>
    %41 = vector.extract_strided_slice %9 {offsets = [0, 384], sizes = [16, 128], strides = [1, 1]} : vector<32x768xf32> to vector<16x128xf32>
    %42 = arith.truncf %41 : vector<16x128xf32> to vector<16x128xbf16>
    %43 = vector.shape_cast %42 : vector<16x128xbf16> to vector<2x8x128xbf16>
    %44 = vector.extract_strided_slice %9 {offsets = [16, 512], sizes = [16, 128], strides = [1, 1]} : vector<32x768xf32> to vector<16x128xf32>
    %45 = arith.truncf %44 : vector<16x128xf32> to vector<16x128xbf16>
    %46 = vector.shape_cast %45 : vector<16x128xbf16> to vector<2x8x128xbf16>
    %47 = vector.extract_strided_slice %9 {offsets = [16, 640], sizes = [16, 128], strides = [1, 1]} : vector<32x768xf32> to vector<16x128xf32>
    %48 = arith.truncf %47 : vector<16x128xf32> to vector<16x128xbf16>
    %49 = vector.shape_cast %48 : vector<16x128xbf16> to vector<2x8x128xbf16>
    "tpu.trace_start"() <{level = 10 : i32, message = "bqd,bkd->bqk"}> : () -> ()
    %cst_21 = arith.constant dense<0.000000e+00> : vector<2x8x8xf32>
    %50 = tpu.matmul %43, %46, %cst_21 {dimension_numbers = #tpu.dot_dimension_numbers<[2], [2], [1], [1], [0, 0, 0, 1, 1, 1], [0], [0]>} : vector<2x8x128xbf16>, vector<2x8x128xbf16>, vector<2x8x8xf32> -> vector<2x8x8xf32>
    %cst_22 = arith.constant -1.000000e+30 : f32
    "tpu.trace_stop"() : () -> ()
    %51 = vector.broadcast %cst_22 : f32 to vector<2x8x8xf32>
    %52 = arith.select %12, %50, %51 : vector<2x8x8xi1>, vector<2x8x8xf32>
    %cst_23 = arith.constant dense<0xFF800000> : vector<2x8xf32>
    %53 = vector.multi_reduction <maximumf>, %52, %cst_23 [2] : vector<2x8x8xf32> to vector<2x8xf32>
    %54 = vector.shape_cast %53 : vector<2x8xf32> to vector<2x8x1xf32>
    %55 = vector.broadcast %54 : vector<2x8x1xf32> to vector<2x8x8xf32>
    %56 = arith.subf %52, %55 : vector<2x8x8xf32>
    %57 = math.exp %56 : vector<2x8x8xf32>
    %cst_24 = arith.constant dense<0.000000e+00> : vector<2x8xf32>
    %58 = vector.multi_reduction <add>, %57, %cst_24 [2] : vector<2x8x8xf32> to vector<2x8xf32>
    %59 = vector.shape_cast %58 : vector<2x8xf32> to vector<2x8x1xf32>
    %60 = tpu.reciprocal %59 {approx = true} : vector<2x8x1xf32> -> vector<2x8x1xf32>
    %61 = vector.broadcast %60 : vector<2x8x1xf32> to vector<2x8x8xf32>
    %62 = arith.mulf %57, %61 : vector<2x8x8xf32>
    %63 = arith.truncf %62 : vector<2x8x8xf32> to vector<2x8x8xbf16>
    "tpu.trace_start"() <{level = 10 : i32, message = "bqk,bkd->bqd"}> : () -> ()
    %cst_25 = arith.constant dense<0.000000e+00> : vector<2x8x128xf32>
    %64 = tpu.matmul %63, %49, %cst_25 {dimension_numbers = #tpu.dot_dimension_numbers<[2], [1], [1], [2], [0, 0, 0, 1, 1, 2], [0], [0]>} : vector<2x8x8xbf16>, vector<2x8x128xbf16>, vector<2x8x128xf32> -> vector<2x8x128xf32>
    "tpu.trace_stop"() : () -> ()
    %65 = vector.shape_cast %64 : vector<2x8x128xf32> to vector<16x128xf32>
    %66 = arith.truncf %65 : vector<16x128xf32> to vector<16x128xbf16>
    %c128 = arith.constant 128 : index
    %c0_26 = arith.constant 0 : index
    %67 = vector.load %arg6[%c128, %c0_26] : memref<256x256xbf16, #tpu.memory_space<vmem>>, vector<128x256xbf16>
    %cst_27 = arith.constant dense<0.000000e+00> : vector<16x256xf32>
    %68 = tpu.matmul %66, %67, %cst_27 {dimension_numbers = #tpu.dot_dimension_numbers<[1], [0], [0], [1], [0, 0, 1, 1], [], []>} : vector<16x128xbf16>, vector<128x256xbf16>, vector<16x256xf32> -> vector<16x256xf32>
    %69 = arith.addf %40, %68 : vector<16x256xf32>
    %c0_28 = arith.constant 0 : index
    %c0_29 = arith.constant 0 : index
    %70 = vector.load %arg7[%c0_28, %c0_29] : memref<1x256xf32, #tpu.memory_space<vmem>>, vector<1x256xf32>
    %71 = vector.broadcast %70 : vector<1x256xf32> to vector<16x256xf32>
    %72 = arith.addf %69, %71 : vector<16x256xf32>
    %73 = vector.extract_strided_slice %72 {offsets = [0, 0], sizes = [16, 32], strides = [1, 1]} : vector<16x256xf32> to vector<16x32xf32>
    %74 = vector.shape_cast %73 : vector<16x32xf32> to vector<2x8x32xf32>
    %c0_30 = arith.constant 0 : index
    %c0_31 = arith.constant 0 : index
    %c0_32 = arith.constant 0 : index
    %75 = vector.load %arg12[%c0_30, %c0_31, %c0_32] : memref<2x8x32xf32, #tpu.memory_space<vmem>>, vector<2x8x32xf32>
    tpu.vector_store %arg12[%c0_30, %c0_31, %c0_32], %74 {strides = array<i32>} : memref<2x8x32xf32, #tpu.memory_space<vmem>>, vector<2x8x32xf32>,
    %76 = vector.extract_strided_slice %72 {offsets = [0, 128], sizes = [16, 128], strides = [1, 1]} : vector<16x256xf32> to vector<16x128xf32>
    %77 = vector.shape_cast %76 : vector<16x128xf32> to vector<2x8x128xf32>
    %c0_33 = arith.constant 0 : index
    %c0_34 = arith.constant 0 : index
    %78 = vector.load %arg8[%c0_33, %c0_34] : memref<32x128xbf16, #tpu.memory_space<vmem>>, vector<32x128xbf16>
    %cst_35 = arith.constant 0.000000e+00 : f32
    %79 = vector.broadcast %cst_35 : f32 to vector<2x32xf32>
    %cst_36 = arith.constant 0.000000e+00 : f32
    %80 = vector.broadcast %cst_36 : f32 to vector<2x32xf32>
    %81 = vector.extract_strided_slice %77 {offsets = [0, 0, 0], sizes = [2, 1, 128], strides = [1, 1, 1]} : vector<2x8x128xf32> to vector<2x1x128xf32>
    %82 = vector.shape_cast %81 : vector<2x1x128xf32> to vector<2x128xf32>
    %83 = arith.truncf %79 : vector<2x32xf32> to vector<2x32xbf16>
    %cst_37 = arith.constant dense<0.000000e+00> : vector<2x128xf32>
    %84 = tpu.matmul %83, %78, %cst_37 {dimension_numbers = #tpu.dot_dimension_numbers<[1], [0], [0], [1], [0, 0, 1, 1], [], []>} : vector<2x32xbf16>, vector<32x128xbf16>, vector<2x128xf32> -> vector<2x128xf32>
    %85 = arith.addf %82, %84 : vector<2x128xf32>
    %86 = arith.negf %85 : vector<2x128xf32>
    %87 = math.exp %86 : vector<2x128xf32>
    %cst_38 = arith.constant 1.000000e+00 : f32
    %88 = vector.broadcast %cst_38 : f32 to vector<2x128xf32>
    %89 = arith.addf %88, %87 : vector<2x128xf32>
    %90 = arith.divf %88, %89 : vector<2x128xf32>
    %91 = vector.extract_strided_slice %85 {offsets = [0, 64], sizes = [2, 32], strides = [1, 1]} : vector<2x128xf32> to vector<2x32xf32>
    %92 = math.tanh %91 : vector<2x32xf32>
    %93 = vector.extract_strided_slice %90 {offsets = [0, 0], sizes = [2, 32], strides = [1, 1]} : vector<2x128xf32> to vector<2x32xf32>
    %94 = vector.extract_strided_slice %90 {offsets = [0, 32], sizes = [2, 32], strides = [1, 1]} : vector<2x128xf32> to vector<2x32xf32>
    %95 = vector.extract_strided_slice %90 {offsets = [0, 96], sizes = [2, 32], strides = [1, 1]} : vector<2x128xf32> to vector<2x32xf32>
    %96 = arith.mulf %94, %80 : vector<2x32xf32>
    %97 = arith.mulf %93, %92 : vector<2x32xf32>
    %98 = arith.addf %96, %97 : vector<2x32xf32>
    %99 = math.tanh %98 : vector<2x32xf32>
    %100 = arith.mulf %95, %99 : vector<2x32xf32>
    %c0_39 = arith.constant 0 : index
    %c0_40 = arith.constant 0 : index
    %c0_41 = arith.constant 0 : index
    %101 = vector.load %arg13[%c0_39, %c0_40, %c0_41] : memref<2x8x32xf32, #tpu.memory_space<vmem>>, vector<2x1x32xf32>
    %102 = vector.shape_cast %101 : vector<2x1x32xf32> to vector<2x32xf32>
    %103 = vector.shape_cast %100 : vector<2x32xf32> to vector<2x1x32xf32>
    tpu.vector_store %arg13[%c0_39, %c0_40, %c0_41], %103 {strides = array<i32>} : memref<2x8x32xf32, #tpu.memory_space<vmem>>, vector<2x1x32xf32>,
    %104 = vector.extract_strided_slice %77 {offsets = [0, 1, 0], sizes = [2, 1, 128], strides = [1, 1, 1]} : vector<2x8x128xf32> to vector<2x1x128xf32>
    %105 = vector.shape_cast %104 : vector<2x1x128xf32> to vector<2x128xf32>
    %106 = arith.truncf %100 : vector<2x32xf32> to vector<2x32xbf16>
    %cst_42 = arith.constant dense<0.000000e+00> : vector<2x128xf32>
    %107 = tpu.matmul %106, %78, %cst_42 {dimension_numbers = #tpu.dot_dimension_numbers<[1], [0], [0], [1], [0, 0, 1, 1], [], []>} : vector<2x32xbf16>, vector<32x128xbf16>, vector<2x128xf32> -> vector<2x128xf32>
    %108 = arith.addf %105, %107 : vector<2x128xf32>
    %109 = arith.negf %108 : vector<2x128xf32>
    %110 = math.exp %109 : vector<2x128xf32>
    %cst_43 = arith.constant 1.000000e+00 : f32
    %111 = vector.broadcast %cst_43 : f32 to vector<2x128xf32>
    %112 = arith.addf %111, %110 : vector<2x128xf32>
    %113 = arith.divf %111, %112 : vector<2x128xf32>
    %114 = vector.extract_strided_slice %108 {offsets = [0, 64], sizes = [2, 32], strides = [1, 1]} : vector<2x128xf32> to vector<2x32xf32>
    %115 = math.tanh %114 : vector<2x32xf32>
    %116 = vector.extract_strided_slice %113 {offsets = [0, 0], sizes = [2, 32], strides = [1, 1]} : vector<2x128xf32> to vector<2x32xf32>
    %117 = vector.extract_strided_slice %113 {offsets = [0, 32], sizes = [2, 32], strides = [1, 1]} : vector<2x128xf32> to vector<2x32xf32>
    %118 = vector.extract_strided_slice %113 {offsets = [0, 96], sizes = [2, 32], strides = [1, 1]} : vector<2x128xf32> to vector<2x32xf32>
    %119 = arith.mulf %117, %98 : vector<2x32xf32>
    %120 = arith.mulf %116, %115 : vector<2x32xf32>
    %121 = arith.addf %119, %120 : vector<2x32xf32>
    %122 = math.tanh %121 : vector<2x32xf32>
    %123 = arith.mulf %118, %122 : vector<2x32xf32>
    %c0_44 = arith.constant 0 : index
    %c1 = arith.constant 1 : index
    %c0_45 = arith.constant 0 : index
    %124 = vector.load %arg13[%c0_44, %c1, %c0_45] : memref<2x8x32xf32, #tpu.memory_space<vmem>>, vector<2x1x32xf32>
    %125 = vector.shape_cast %124 : vector<2x1x32xf32> to vector<2x32xf32>
    %126 = vector.shape_cast %123 : vector<2x32xf32> to vector<2x1x32xf32>
    tpu.vector_store %arg13[%c0_44, %c1, %c0_45], %126 {strides = array<i32>} : memref<2x8x32xf32, #tpu.memory_space<vmem>>, vector<2x1x32xf32>,
    %127 = vector.extract_strided_slice %77 {offsets = [0, 2, 0], sizes = [2, 1, 128], strides = [1, 1, 1]} : vector<2x8x128xf32> to vector<2x1x128xf32>
    %128 = vector.shape_cast %127 : vector<2x1x128xf32> to vector<2x128xf32>
    %129 = arith.truncf %123 : vector<2x32xf32> to vector<2x32xbf16>
    %cst_46 = arith.constant dense<0.000000e+00> : vector<2x128xf32>
    %130 = tpu.matmul %129, %78, %cst_46 {dimension_numbers = #tpu.dot_dimension_numbers<[1], [0], [0], [1], [0, 0, 1, 1], [], []>} : vector<2x32xbf16>, vector<32x128xbf16>, vector<2x128xf32> -> vector<2x128xf32>
    %131 = arith.addf %128, %130 : vector<2x128xf32>
    %132 = arith.negf %131 : vector<2x128xf32>
    %133 = math.exp %132 : vector<2x128xf32>
    %cst_47 = arith.constant 1.000000e+00 : f32
    %134 = vector.broadcast %cst_47 : f32 to vector<2x128xf32>
    %135 = arith.addf %134, %133 : vector<2x128xf32>
    %136 = arith.divf %134, %135 : vector<2x128xf32>
    %137 = vector.extract_strided_slice %131 {offsets = [0, 64], sizes = [2, 32], strides = [1, 1]} : vector<2x128xf32> to vector<2x32xf32>
    %138 = math.tanh %137 : vector<2x32xf32>
    %139 = vector.extract_strided_slice %136 {offsets = [0, 0], sizes = [2, 32], strides = [1, 1]} : vector<2x128xf32> to vector<2x32xf32>
    %140 = vector.extract_strided_slice %136 {offsets = [0, 32], sizes = [2, 32], strides = [1, 1]} : vector<2x128xf32> to vector<2x32xf32>
    %141 = vector.extract_strided_slice %136 {offsets = [0, 96], sizes = [2, 32], strides = [1, 1]} : vector<2x128xf32> to vector<2x32xf32>
    %142 = arith.mulf %140, %121 : vector<2x32xf32>
    %143 = arith.mulf %139, %138 : vector<2x32xf32>
    %144 = arith.addf %142, %143 : vector<2x32xf32>
    %145 = math.tanh %144 : vector<2x32xf32>
    %146 = arith.mulf %141, %145 : vector<2x32xf32>
    %c0_48 = arith.constant 0 : index
    %c2 = arith.constant 2 : index
    %c0_49 = arith.constant 0 : index
    %147 = vector.load %arg13[%c0_48, %c2, %c0_49] : memref<2x8x32xf32, #tpu.memory_space<vmem>>, vector<2x1x32xf32>
    %148 = vector.shape_cast %147 : vector<2x1x32xf32> to vector<2x32xf32>
    %149 = vector.shape_cast %146 : vector<2x32xf32> to vector<2x1x32xf32>
    tpu.vector_store %arg13[%c0_48, %c2, %c0_49], %149 {strides = array<i32>} : memref<2x8x32xf32, #tpu.memory_space<vmem>>, vector<2x1x32xf32>,
    %150 = vector.extract_strided_slice %77 {offsets = [0, 3, 0], sizes = [2, 1, 128], strides = [1, 1, 1]} : vector<2x8x128xf32> to vector<2x1x128xf32>
    %151 = vector.shape_cast %150 : vector<2x1x128xf32> to vector<2x128xf32>
    %152 = arith.truncf %146 : vector<2x32xf32> to vector<2x32xbf16>
    %cst_50 = arith.constant dense<0.000000e+00> : vector<2x128xf32>
    %153 = tpu.matmul %152, %78, %cst_50 {dimension_numbers = #tpu.dot_dimension_numbers<[1], [0], [0], [1], [0, 0, 1, 1], [], []>} : vector<2x32xbf16>, vector<32x128xbf16>, vector<2x128xf32> -> vector<2x128xf32>
    %154 = arith.addf %151, %153 : vector<2x128xf32>
    %155 = arith.negf %154 : vector<2x128xf32>
    %156 = math.exp %155 : vector<2x128xf32>
    %cst_51 = arith.constant 1.000000e+00 : f32
    %157 = vector.broadcast %cst_51 : f32 to vector<2x128xf32>
    %158 = arith.addf %157, %156 : vector<2x128xf32>
    %159 = arith.divf %157, %158 : vector<2x128xf32>
    %160 = vector.extract_strided_slice %154 {offsets = [0, 64], sizes = [2, 32], strides = [1, 1]} : vector<2x128xf32> to vector<2x32xf32>
    %161 = math.tanh %160 : vector<2x32xf32>
    %162 = vector.extract_strided_slice %159 {offsets = [0, 0], sizes = [2, 32], strides = [1, 1]} : vector<2x128xf32> to vector<2x32xf32>
    %163 = vector.extract_strided_slice %159 {offsets = [0, 32], sizes = [2, 32], strides = [1, 1]} : vector<2x128xf32> to vector<2x32xf32>
    %164 = vector.extract_strided_slice %159 {offsets = [0, 96], sizes = [2, 32], strides = [1, 1]} : vector<2x128xf32> to vector<2x32xf32>
    %165 = arith.mulf %163, %144 : vector<2x32xf32>
    %166 = arith.mulf %162, %161 : vector<2x32xf32>
    %167 = arith.addf %165, %166 : vector<2x32xf32>
    %168 = math.tanh %167 : vector<2x32xf32>
    %169 = arith.mulf %164, %168 : vector<2x32xf32>
    %c0_52 = arith.constant 0 : index
    %c3 = arith.constant 3 : index
    %c0_53 = arith.constant 0 : index
    %170 = vector.load %arg13[%c0_52, %c3, %c0_53] : memref<2x8x32xf32, #tpu.memory_space<vmem>>, vector<2x1x32xf32>
    %171 = vector.shape_cast %170 : vector<2x1x32xf32> to vector<2x32xf32>
    %172 = vector.shape_cast %169 : vector<2x32xf32> to vector<2x1x32xf32>
    tpu.vector_store %arg13[%c0_52, %c3, %c0_53], %172 {strides = array<i32>} : memref<2x8x32xf32, #tpu.memory_space<vmem>>, vector<2x1x32xf32>,
    %173 = vector.extract_strided_slice %77 {offsets = [0, 4, 0], sizes = [2, 1, 128], strides = [1, 1, 1]} : vector<2x8x128xf32> to vector<2x1x128xf32>
    %174 = vector.shape_cast %173 : vector<2x1x128xf32> to vector<2x128xf32>
    %175 = arith.truncf %169 : vector<2x32xf32> to vector<2x32xbf16>
    %cst_54 = arith.constant dense<0.000000e+00> : vector<2x128xf32>
    %176 = tpu.matmul %175, %78, %cst_54 {dimension_numbers = #tpu.dot_dimension_numbers<[1], [0], [0], [1], [0, 0, 1, 1], [], []>} : vector<2x32xbf16>, vector<32x128xbf16>, vector<2x128xf32> -> vector<2x128xf32>
    %177 = arith.addf %174, %176 : vector<2x128xf32>
    %178 = arith.negf %177 : vector<2x128xf32>
    %179 = math.exp %178 : vector<2x128xf32>
    %cst_55 = arith.constant 1.000000e+00 : f32
    %180 = vector.broadcast %cst_55 : f32 to vector<2x128xf32>
    %181 = arith.addf %180, %179 : vector<2x128xf32>
    %182 = arith.divf %180, %181 : vector<2x128xf32>
    %183 = vector.extract_strided_slice %177 {offsets = [0, 64], sizes = [2, 32], strides = [1, 1]} : vector<2x128xf32> to vector<2x32xf32>
    %184 = math.tanh %183 : vector<2x32xf32>
    %185 = vector.extract_strided_slice %182 {offsets = [0, 0], sizes = [2, 32], strides = [1, 1]} : vector<2x128xf32> to vector<2x32xf32>
    %186 = vector.extract_strided_slice %182 {offsets = [0, 32], sizes = [2, 32], strides = [1, 1]} : vector<2x128xf32> to vector<2x32xf32>
    %187 = vector.extract_strided_slice %182 {offsets = [0, 96], sizes = [2, 32], strides = [1, 1]} : vector<2x128xf32> to vector<2x32xf32>
    %188 = arith.mulf %186, %167 : vector<2x32xf32>
    %189 = arith.mulf %185, %184 : vector<2x32xf32>
    %190 = arith.addf %188, %189 : vector<2x32xf32>
    %191 = math.tanh %190 : vector<2x32xf32>
    %192 = arith.mulf %187, %191 : vector<2x32xf32>
    %c0_56 = arith.constant 0 : index
    %c4 = arith.constant 4 : index
    %c0_57 = arith.constant 0 : index
    %193 = vector.load %arg13[%c0_56, %c4, %c0_57] : memref<2x8x32xf32, #tpu.memory_space<vmem>>, vector<2x1x32xf32>
    %194 = vector.shape_cast %193 : vector<2x1x32xf32> to vector<2x32xf32>
    %195 = vector.shape_cast %192 : vector<2x32xf32> to vector<2x1x32xf32>
    tpu.vector_store %arg13[%c0_56, %c4, %c0_57], %195 {strides = array<i32>} : memref<2x8x32xf32, #tpu.memory_space<vmem>>, vector<2x1x32xf32>,
    %196 = vector.extract_strided_slice %77 {offsets = [0, 5, 0], sizes = [2, 1, 128], strides = [1, 1, 1]} : vector<2x8x128xf32> to vector<2x1x128xf32>
    %197 = vector.shape_cast %196 : vector<2x1x128xf32> to vector<2x128xf32>
    %198 = arith.truncf %192 : vector<2x32xf32> to vector<2x32xbf16>
    %cst_58 = arith.constant dense<0.000000e+00> : vector<2x128xf32>
    %199 = tpu.matmul %198, %78, %cst_58 {dimension_numbers = #tpu.dot_dimension_numbers<[1], [0], [0], [1], [0, 0, 1, 1], [], []>} : vector<2x32xbf16>, vector<32x128xbf16>, vector<2x128xf32> -> vector<2x128xf32>
    %200 = arith.addf %197, %199 : vector<2x128xf32>
    %201 = arith.negf %200 : vector<2x128xf32>
    %202 = math.exp %201 : vector<2x128xf32>
    %cst_59 = arith.constant 1.000000e+00 : f32
    %203 = vector.broadcast %cst_59 : f32 to vector<2x128xf32>
    %204 = arith.addf %203, %202 : vector<2x128xf32>
    %205 = arith.divf %203, %204 : vector<2x128xf32>
    %206 = vector.extract_strided_slice %200 {offsets = [0, 64], sizes = [2, 32], strides = [1, 1]} : vector<2x128xf32> to vector<2x32xf32>
    %207 = math.tanh %206 : vector<2x32xf32>
    %208 = vector.extract_strided_slice %205 {offsets = [0, 0], sizes = [2, 32], strides = [1, 1]} : vector<2x128xf32> to vector<2x32xf32>
    %209 = vector.extract_strided_slice %205 {offsets = [0, 32], sizes = [2, 32], strides = [1, 1]} : vector<2x128xf32> to vector<2x32xf32>
    %210 = vector.extract_strided_slice %205 {offsets = [0, 96], sizes = [2, 32], strides = [1, 1]} : vector<2x128xf32> to vector<2x32xf32>
    %211 = arith.mulf %209, %190 : vector<2x32xf32>
    %212 = arith.mulf %208, %207 : vector<2x32xf32>
    %213 = arith.addf %211, %212 : vector<2x32xf32>
    %214 = math.tanh %213 : vector<2x32xf32>
    %215 = arith.mulf %210, %214 : vector<2x32xf32>
    %c0_60 = arith.constant 0 : index
    %c5 = arith.constant 5 : index
    %c0_61 = arith.constant 0 : index
    %216 = vector.load %arg13[%c0_60, %c5, %c0_61] : memref<2x8x32xf32, #tpu.memory_space<vmem>>, vector<2x1x32xf32>
    %217 = vector.shape_cast %216 : vector<2x1x32xf32> to vector<2x32xf32>
    %218 = vector.shape_cast %215 : vector<2x32xf32> to vector<2x1x32xf32>
    tpu.vector_store %arg13[%c0_60, %c5, %c0_61], %218 {strides = array<i32>} : memref<2x8x32xf32, #tpu.memory_space<vmem>>, vector<2x1x32xf32>,
    %219 = vector.extract_strided_slice %77 {offsets = [0, 6, 0], sizes = [2, 1, 128], strides = [1, 1, 1]} : vector<2x8x128xf32> to vector<2x1x128xf32>
    %220 = vector.shape_cast %219 : vector<2x1x128xf32> to vector<2x128xf32>
    %221 = arith.truncf %215 : vector<2x32xf32> to vector<2x32xbf16>
    %cst_62 = arith.constant dense<0.000000e+00> : vector<2x128xf32>
    %222 = tpu.matmul %221, %78, %cst_62 {dimension_numbers = #tpu.dot_dimension_numbers<[1], [0], [0], [1], [0, 0, 1, 1], [], []>} : vector<2x32xbf16>, vector<32x128xbf16>, vector<2x128xf32> -> vector<2x128xf32>
    %223 = arith.addf %220, %222 : vector<2x128xf32>
    %224 = arith.negf %223 : vector<2x128xf32>
    %225 = math.exp %224 : vector<2x128xf32>
    %cst_63 = arith.constant 1.000000e+00 : f32
    %226 = vector.broadcast %cst_63 : f32 to vector<2x128xf32>
    %227 = arith.addf %226, %225 : vector<2x128xf32>
    %228 = arith.divf %226, %227 : vector<2x128xf32>
    %229 = vector.extract_strided_slice %223 {offsets = [0, 64], sizes = [2, 32], strides = [1, 1]} : vector<2x128xf32> to vector<2x32xf32>
    %230 = math.tanh %229 : vector<2x32xf32>
    %231 = vector.extract_strided_slice %228 {offsets = [0, 0], sizes = [2, 32], strides = [1, 1]} : vector<2x128xf32> to vector<2x32xf32>
    %232 = vector.extract_strided_slice %228 {offsets = [0, 32], sizes = [2, 32], strides = [1, 1]} : vector<2x128xf32> to vector<2x32xf32>
    %233 = vector.extract_strided_slice %228 {offsets = [0, 96], sizes = [2, 32], strides = [1, 1]} : vector<2x128xf32> to vector<2x32xf32>
    %234 = arith.mulf %232, %213 : vector<2x32xf32>
    %235 = arith.mulf %231, %230 : vector<2x32xf32>
    %236 = arith.addf %234, %235 : vector<2x32xf32>
    %237 = math.tanh %236 : vector<2x32xf32>
    %238 = arith.mulf %233, %237 : vector<2x32xf32>
    %c0_64 = arith.constant 0 : index
    %c6 = arith.constant 6 : index
    %c0_65 = arith.constant 0 : index
    %239 = vector.load %arg13[%c0_64, %c6, %c0_65] : memref<2x8x32xf32, #tpu.memory_space<vmem>>, vector<2x1x32xf32>
    %240 = vector.shape_cast %239 : vector<2x1x32xf32> to vector<2x32xf32>
    %241 = vector.shape_cast %238 : vector<2x32xf32> to vector<2x1x32xf32>
    tpu.vector_store %arg13[%c0_64, %c6, %c0_65], %241 {strides = array<i32>} : memref<2x8x32xf32, #tpu.memory_space<vmem>>, vector<2x1x32xf32>,
    %242 = vector.extract_strided_slice %77 {offsets = [0, 7, 0], sizes = [2, 1, 128], strides = [1, 1, 1]} : vector<2x8x128xf32> to vector<2x1x128xf32>
    %243 = vector.shape_cast %242 : vector<2x1x128xf32> to vector<2x128xf32>
    %244 = arith.truncf %238 : vector<2x32xf32> to vector<2x32xbf16>
    %cst_66 = arith.constant dense<0.000000e+00> : vector<2x128xf32>
    %245 = tpu.matmul %244, %78, %cst_66 {dimension_numbers = #tpu.dot_dimension_numbers<[1], [0], [0], [1], [0, 0, 1, 1], [], []>} : vector<2x32xbf16>, vector<32x128xbf16>, vector<2x128xf32> -> vector<2x128xf32>
    %246 = arith.addf %243, %245 : vector<2x128xf32>
    %247 = arith.negf %246 : vector<2x128xf32>
    %248 = math.exp %247 : vector<2x128xf32>
    %cst_67 = arith.constant 1.000000e+00 : f32
    %249 = vector.broadcast %cst_67 : f32 to vector<2x128xf32>
    %250 = arith.addf %249, %248 : vector<2x128xf32>
    %251 = arith.divf %249, %250 : vector<2x128xf32>
    %252 = vector.extract_strided_slice %246 {offsets = [0, 64], sizes = [2, 32], strides = [1, 1]} : vector<2x128xf32> to vector<2x32xf32>
    %253 = math.tanh %252 : vector<2x32xf32>
    %254 = vector.extract_strided_slice %251 {offsets = [0, 0], sizes = [2, 32], strides = [1, 1]} : vector<2x128xf32> to vector<2x32xf32>
    %255 = vector.extract_strided_slice %251 {offsets = [0, 32], sizes = [2, 32], strides = [1, 1]} : vector<2x128xf32> to vector<2x32xf32>
    %256 = vector.extract_strided_slice %251 {offsets = [0, 96], sizes = [2, 32], strides = [1, 1]} : vector<2x128xf32> to vector<2x32xf32>
    %257 = arith.mulf %255, %236 : vector<2x32xf32>
    %258 = arith.mulf %254, %253 : vector<2x32xf32>
    %259 = arith.addf %257, %258 : vector<2x32xf32>
    %260 = math.tanh %259 : vector<2x32xf32>
    %261 = arith.mulf %256, %260 : vector<2x32xf32>
    %c0_68 = arith.constant 0 : index
    %c7 = arith.constant 7 : index
    %c0_69 = arith.constant 0 : index
    %262 = vector.load %arg13[%c0_68, %c7, %c0_69] : memref<2x8x32xf32, #tpu.memory_space<vmem>>, vector<2x1x32xf32>
    %263 = vector.shape_cast %262 : vector<2x1x32xf32> to vector<2x32xf32>
    %264 = vector.shape_cast %261 : vector<2x32xf32> to vector<2x1x32xf32>
    tpu.vector_store %arg13[%c0_68, %c7, %c0_69], %264 {strides = array<i32>} : memref<2x8x32xf32, #tpu.memory_space<vmem>>, vector<2x1x32xf32>,
    %c0_70 = arith.constant 0 : index
    %c0_71 = arith.constant 0 : index
    %c0_72 = arith.constant 0 : index
    %265 = vector.load %arg13[%c0_70, %c0_71, %c0_72] : memref<2x8x32xf32, #tpu.memory_space<vmem>>, vector<2x8x32xf32>
    %266 = vector.shape_cast %265 : vector<2x8x32xf32> to vector<16x32xf32>
    %267 = arith.truncf %266 : vector<16x32xf32> to vector<16x32xbf16>
    %c0_73 = arith.constant 0 : index
    %c0_74 = arith.constant 0 : index
    %268 = vector.load %arg9[%c0_73, %c0_74] : memref<32x16xbf16, #tpu.memory_space<vmem>>, vector<32x16xbf16>
    %cst_75 = arith.constant dense<0.000000e+00> : vector<16x16xf32>
    %269 = tpu.matmul %267, %268, %cst_75 {dimension_numbers = #tpu.dot_dimension_numbers<[1], [0], [0], [1], [0, 0, 1, 1], [], []>} : vector<16x32xbf16>, vector<32x16xbf16>, vector<16x16xf32> -> vector<16x16xf32>
    %c0_76 = arith.constant 0 : index
    %c0_77 = arith.constant 0 : index
    %270 = vector.load %arg10[%c0_76, %c0_77] : memref<1x16xf32, #tpu.memory_space<vmem>>, vector<1x16xf32>
    %271 = vector.broadcast %270 : vector<1x16xf32> to vector<16x16xf32>
    %272 = arith.addf %269, %271 : vector<16x16xf32>
    %273 = vector.shape_cast %272 : vector<16x16xf32> to vector<2x8x16xf32>
    %c0_78 = arith.constant 0 : index
    %c0_79 = arith.constant 0 : index
    %c0_80 = arith.constant 0 : index
    %274 = vector.load %arg11[%c0_78, %c0_79, %c0_80] : memref<2x8x16xf32, #tpu.memory_space<vmem>>, vector<2x8x16xf32>
    tpu.vector_store %arg11[%c0_78, %c0_79, %c0_80], %273 {strides = array<i32>} : memref<2x8x16xf32, #tpu.memory_space<vmem>>, vector<2x8x16xf32>,
    return
  }
  func.func @transform_0(%arg0: i32) -> (i32, i32, i32) {
    %c0_i32 = arith.constant 0 : i32
    %c0_i32_0 = arith.constant 0 : i32
    %c0_i32_1 = arith.constant 0 : i32
    return %arg0, %c0_i32, %c0_i32_0 : i32, i32, i32
  }
  func.func @transform_1(%arg0: i32) -> (i32, i32, i32) {
    %c0_i32 = arith.constant 0 : i32
    %c0_i32_0 = arith.constant 0 : i32
    %c0_i32_1 = arith.constant 0 : i32
    return %arg0, %c0_i32, %c0_i32_0 : i32, i32, i32
  }
  func.func @transform_2(%arg0: i32) -> (i32, i32, i32) {
    %c0_i32 = arith.constant 0 : i32
    %c0_i32_0 = arith.constant 0 : i32
    %c0_i32_1 = arith.constant 0 : i32
    return %arg0, %c0_i32, %c0_i32_0 : i32, i32, i32
  }
  func.func @transform_3(%arg0: i32) -> (i32, i32) {
    %c0_i32 = arith.constant 0 : i32
    %c0_i32_0 = arith.constant 0 : i32
    %c0_i32_1 = arith.constant 0 : i32
    return %c0_i32, %c0_i32_0 : i32, i32
  }
  func.func @transform_4(%arg0: i32) -> (i32, i32) {
    %c0_i32 = arith.constant 0 : i32
    %c0_i32_0 = arith.constant 0 : i32
    %c0_i32_1 = arith.constant 0 : i32
    return %c0_i32, %c0_i32_0 : i32, i32
  }
  func.func @transform_5(%arg0: i32) -> (i32, i32) {
    %c0_i32 = arith.constant 0 : i32
    %c0_i32_0 = arith.constant 0 : i32
    %c0_i32_1 = arith.constant 0 : i32
    return %c0_i32, %c0_i32_0 : i32, i32
  }
  func.func @transform_6(%arg0: i32) -> (i32, i32) {
    %c0_i32 = arith.constant 0 : i32
    %c0_i32_0 = arith.constant 0 : i32
    %c0_i32_1 = arith.constant 0 : i32
    return %c0_i32, %c0_i32_0 : i32, i32
  }
  func.func @transform_7(%arg0: i32) -> (i32, i32) {
    %c0_i32 = arith.constant 0 : i32
    %c0_i32_0 = arith.constant 0 : i32
    %c0_i32_1 = arith.constant 0 : i32
    return %c0_i32, %c0_i32_0 : i32, i32
  }
  func.func @transform_8(%arg0: i32) -> (i32, i32) {
    %c0_i32 = arith.constant 0 : i32
    %c0_i32_0 = arith.constant 0 : i32
    %c0_i32_1 = arith.constant 0 : i32
    return %c0_i32, %c0_i32_0 : i32, i32
  }
  func.func @transform_9(%arg0: i32) -> (i32, i32) {
    %c0_i32 = arith.constant 0 : i32
    %c0_i32_0 = arith.constant 0 : i32
    %c0_i32_1 = arith.constant 0 : i32
    return %c0_i32, %c0_i32_0 : i32, i32
  }
  func.func @transform_10(%arg0: i32) -> (i32, i32, i32) {
    %c0_i32 = arith.constant 0 : i32
    %c0_i32_0 = arith.constant 0 : i32
    %c0_i32_1 = arith.constant 0 : i32
    return %arg0, %c0_i32, %c0_i32_0 : i32, i32, i32
  }
  func.func @transform_11(%arg0: i32) -> (i32, i32, i32) {
    %c0_i32 = arith.constant 0 : i32
    %c0_i32_0 = arith.constant 0 : i32
    %c0_i32_1 = arith.constant 0 : i32
    return %arg0, %c0_i32, %c0_i32_0 : i32, i32, i32
  }
}

</mosaic_0001>

<llo_original>
// kernel: tpu_custom_call.1
$region0: #{tpu_custom_call.1}
  #allocation0 [shape = 'u32[]', space=smem, size = 0x4, offset = 0x4, fixed_abs, tag = 'smem constant byte address 0x4 - core index']
  #allocation1 [shape = 'u32[144,128]{1,0:T(1,128)}', space=vmem, size = 0x12000, scoped, tag = 'internal scratch']
  #allocation2 [shape = 'f32[2,8,32]{2,1,0:T(8,128)}', space=vmem, size = 0x2000, scoped, tag = 'scratch operand']
  %s0 = inlined_call_operand.hbm [shape: bf16[2,8,32], index: 0, kind: input, shape index: {}]
  %s1 = inlined_call_operand.hbm [shape: bf16[2,8,32], index: 1, kind: input, shape index: {}]
  %s2 = inlined_call_operand.vmem [shape: f32[2,8,8], index: 2, kind: input, shape index: {}]
  %s3 = inlined_call_operand.hbm [shape: bf16[32,768], index: 3, kind: input, shape index: {}]
  %s4 = inlined_call_operand.hbm [shape: f32[1,768], index: 4, kind: input, shape index: {}]
  %s5 = inlined_call_operand.hbm [shape: bf16[256,256], index: 5, kind: input, shape index: {}]
  %s6 = inlined_call_operand.vmem [shape: f32[1,256], index: 6, kind: input, shape index: {}]
  %s7 = inlined_call_operand.vmem [shape: bf16[32,128], index: 7, kind: input, shape index: {}]
  %s8 = inlined_call_operand.vmem [shape: bf16[32,16], index: 8, kind: input, shape index: {}]
  %s9 = inlined_call_operand.vmem [shape: f32[1,16], index: 9, kind: input, shape index: {}]
  %s10 = inlined_call_operand.hbm [shape: f32[2,8,16], index: 10, kind: output, shape index: {0}]
  %s11 = inlined_call_operand.hbm [shape: f32[2,8,32], index: 11, kind: output, shape index: {1}]
  %12 = xla_tuple %s10, %s11
  %s13 = sld [smem:[#allocation0]]
  $region78: #{tpu_custom_call.1} parent=0
    _
  %s15 = ssub.s32 1, %s13
  %s16 = scalar_select 0, %s15, %s13
  $region1: #{tpu_custom_call.1} parent=0
    #allocation3 [shape = 'u8[4096]{0}', space=vmem, size = 0x1000, scoped, tag = 'input window, operand 0, single buffered']
    #allocation4 [shape = 's32[1]{0}', space=sflag, size = 0x4, scoped, tag = 'scoped memory for tpu_custom_call.1']
    #allocation5 [shape = 's32[1]{0}', space=sflag, size = 0x4, scoped, tag = 'scoped memory for tpu_custom_call.1']
    #allocation6 [shape = 'u8[4096]{0}', space=vmem, size = 0x1000, scoped, tag = 'input window, operand 1, single buffered']
    #allocation7 [shape = 's32[1]{0}', space=sflag, size = 0x4, scoped, tag = 'scoped memory for tpu_custom_call.1']
    #allocation8 [shape = 'u8[49152]{0}', space=vmem, size = 0xc000, scoped, tag = 'input window, operand 3, single buffered']
    #allocation9 [shape = 'u8[3072]{0}', space=vmem, size = 0xc00, scoped, tag = 'input window, operand 4, single buffered']
    #allocation10 [shape = 's32[1]{0}', space=sflag, size = 0x4, scoped, tag = 'scoped memory for tpu_custom_call.1']
    #allocation11 [shape = 'u8[131072]{0}', space=vmem, size = 0x20000, scoped, tag = 'input window, operand 5, single buffered']
    #allocation12 [shape = 'u8[8192]{0}', space=vmem, size = 0x2000, scoped, tag = 'output window, operand 0, single buffered']
    #allocation13 [shape = 'u8[8192]{0}', space=vmem, size = 0x2000, scoped, tag = 'output window, operand 1, single buffered']
    #allocation14 [shape = 's32[1]{0}', space=sflag, size = 0x4, scoped, tag = 'scoped memory for tpu_custom_call.1']
    %17 = vsyncpa [#allocation4], 0
    %18 = vsyncpa [#allocation7], 0
    %19 = vsyncpa [#allocation10], 0
    %20 = vsyncpa [#allocation5], 0
    %21 = vsyncpa [#allocation14], 0
    // Predicated region
    $region2: #{tpu_custom_call.1} parent=1 // pred_check
      _
    $region3: #{tpu_custom_call.1} parent=1 // pred_check_branch
      %23 = sbr.rel (0) target = $region5
    $region4: #{tpu_custom_call.1} parent=1 // pred_region
      %s25 = ssub.s32 128, 128
      %26 = vsyncadd [#allocation4], %s25
      %s27 = sshll.u32 [#allocation3], 4
      %s28 = int_to_ptr.vmem [resolvable:$true] %s27
      %33 = dma.hbm_to_vmem [thread:$0]  %s0, 128, %s28, [#allocation4], 64, 64, 4
    $region5: #{tpu_custom_call.1} parent=1 // pred_fallthru
      _
    // Predicated region
    $region6: #{tpu_custom_call.1} parent=1 // pred_check
      _
    $region7: #{tpu_custom_call.1} parent=1 // pred_check_branch
      %35 = sbr.rel (0) target = $region9
    $region8: #{tpu_custom_call.1} parent=1 // pred_region
      %s37 = ssub.s32 128, 128
      %38 = vsyncadd [#allocation7], %s37
      %s39 = sshll.u32 [#allocation6], 4
      %s40 = int_to_ptr.vmem [resolvable:$true] %s39
      %45 = dma.hbm_to_vmem [thread:$0]  %s1, 128, %s40, [#allocation7], 64, 64, 4
    $region9: #{tpu_custom_call.1} parent=1 // pred_fallthru
      _
    // Predicated region
    $region10: #{tpu_custom_call.1} parent=1 // pred_check
      _
    $region11: #{tpu_custom_call.1} parent=1 // pred_check_branch
      %47 = sbr.rel (0) target = $region13
    $region12: #{tpu_custom_call.1} parent=1 // pred_region
      _
    $region13: #{tpu_custom_call.1} parent=1 // pred_fallthru
      _
    // Predicated region
    $region14: #{tpu_custom_call.1} parent=1 // pred_check
      _
    $region15: #{tpu_custom_call.1} parent=1 // pred_check_branch
      %49 = sbr.rel (0) target = $region17
    $region16: #{tpu_custom_call.1} parent=1 // pred_region
      %s51 = ssub.s32 1536, 1536
      %52 = vsyncadd [#allocation7], %s51
      %s53 = sshll.u32 [#allocation8], 4
      %s54 = int_to_ptr.vmem [resolvable:$true] %s53
      %59 = dma.hbm_to_vmem [thread:$0]  %s3, 1536, %s54, [#allocation7], 384, 384, 24
    $region17: #{tpu_custom_call.1} parent=1 // pred_fallthru
      _
    // Predicated region
    $region18: #{tpu_custom_call.1} parent=1 // pred_check
      _
    $region19: #{tpu_custom_call.1} parent=1 // pred_check_branch
      %61 = sbr.rel (0) target = $region21
    $region20: #{tpu_custom_call.1} parent=1 // pred_region
      %s63 = ssub.s32 96, 96
      %64 = vsyncadd [#allocation10], %s63
      %s66 = sshll.u32 [#allocation9], 4
      %s67 = int_to_ptr.vmem [resolvable:$true] %s66
      %69 = dma.hbm_to_vmem [thread:$0]  %s4, 96, %s67, [#allocation10]
    $region21: #{tpu_custom_call.1} parent=1 // pred_fallthru
      _
    // Predicated region
    $region22: #{tpu_custom_call.1} parent=1 // pred_check
      _
    $region23: #{tpu_custom_call.1} parent=1 // pred_check_branch
      %71 = sbr.rel (0) target = $region25
    $region24: #{tpu_custom_call.1} parent=1 // pred_region
      %s73 = ssub.s32 4096, 4096
      %74 = vsyncadd [#allocation10], %s73
      %s75 = sshll.u32 [#allocation11], 4
      %s76 = int_to_ptr.vmem [resolvable:$true] %s75
      %81 = dma.hbm_to_vmem [thread:$0]  %s5, 4096, %s76, [#allocation10], 128, 128, 8
    $region25: #{tpu_custom_call.1} parent=1 // pred_fallthru
      _
    // Predicated region
    $region26: #{tpu_custom_call.1} parent=1 // pred_check
      _
    $region27: #{tpu_custom_call.1} parent=1 // pred_check_branch
      %83 = sbr.rel (0) target = $region29
    $region28: #{tpu_custom_call.1} parent=1 // pred_region
      _
    $region29: #{tpu_custom_call.1} parent=1 // pred_fallthru
      _
    // Predicated region
    $region30: #{tpu_custom_call.1} parent=1 // pred_check
      _
    $region31: #{tpu_custom_call.1} parent=1 // pred_check_branch
      %85 = sbr.rel (0) target = $region33
    $region32: #{tpu_custom_call.1} parent=1 // pred_region
      _
    $region33: #{tpu_custom_call.1} parent=1 // pred_fallthru
      _
    // Predicated region
    $region34: #{tpu_custom_call.1} parent=1 // pred_check
      _
    $region35: #{tpu_custom_call.1} parent=1 // pred_check_branch
      %87 = sbr.rel (0) target = $region37
    $region36: #{tpu_custom_call.1} parent=1 // pred_region
      _
    $region37: #{tpu_custom_call.1} parent=1 // pred_fallthru
      _
    // Predicated region
    $region38: #{tpu_custom_call.1} parent=1 // pred_check
      _
    $region39: #{tpu_custom_call.1} parent=1 // pred_check_branch
      %89 = sbr.rel (0) target = $region41
    $region40: #{tpu_custom_call.1} parent=1 // pred_region
      _
    $region41: #{tpu_custom_call.1} parent=1 // pred_fallthru
      _
    // Predicated region
    $region42: #{tpu_custom_call.1} parent=1 // pred_check
      _
    $region43: #{tpu_custom_call.1} parent=1 // pred_check_branch
      %91 = sbr.rel (0) target = $region45
    $region44: #{tpu_custom_call.1} parent=1 // pred_region
      %92 = dma.done [#allocation4], 128
    $region45: #{tpu_custom_call.1} parent=1 // pred_fallthru
      _
    // Predicated region
    $region46: #{tpu_custom_call.1} parent=1 // pred_check
      _
    $region47: #{tpu_custom_call.1} parent=1 // pred_check_branch
      %94 = sbr.rel (0) target = $region49
    $region48: #{tpu_custom_call.1} parent=1 // pred_region
      %95 = dma.done [#allocation7], 128
    $region49: #{tpu_custom_call.1} parent=1 // pred_fallthru
      _
    // Predicated region
    $region50: #{tpu_custom_call.1} parent=1 // pred_check
      _
    $region51: #{tpu_custom_call.1} parent=1 // pred_check_branch
      %97 = sbr.rel (0) target = $region53
    $region52: #{tpu_custom_call.1} parent=1 // pred_region
      %98 = dma.done [#allocation7], 1536
    $region53: #{tpu_custom_call.1} parent=1 // pred_fallthru
      _
    // Predicated region
    $region54: #{tpu_custom_call.1} parent=1 // pred_check
      _
    $region55: #{tpu_custom_call.1} parent=1 // pred_check_branch
      %100 = sbr.rel (0) target = $region57
    $region56: #{tpu_custom_call.1} parent=1 // pred_region
      %101 = dma.done [#allocation10], 96
    $region57: #{tpu_custom_call.1} parent=1 // pred_fallthru
      _
    // Predicated region
    $region58: #{tpu_custom_call.1} parent=1 // pred_check
      _
    $region59: #{tpu_custom_call.1} parent=1 // pred_check_branch
      %103 = sbr.rel (0) target = $region61
    $region60: #{tpu_custom_call.1} parent=1 // pred_region
      %104 = dma.done [#allocation10], 4096
    $region61: #{tpu_custom_call.1} parent=1 // pred_fallthru
      _
    %v106 = vld [vmem:[#allocation3] sm:$0xf]
    %v107 = vld [vmem:[#allocation3 + $0x4] sm:$0xf]
    %v108 = vld [vmem:[#allocation6] sm:$0xf]
    %v109 = vld [vmem:[#allocation6 + $0x4] sm:$0xf]
    %v112 = vunpack.c.l.b16 %v106
    %v113 = vunpack.c.l.b16 %v107
    %v114 = vpack.c.b16 %v113, %v112
    %v117 = vunpack.c.l.b16 %v108
    %v118 = vunpack.c.l.b16 %v109
    %v119 = vpack.c.b16 %v118, %v117
    %v120 = vld [vmem:[#allocation8] sm:$0xff]
    %v121 = vld [vmem:[#allocation8 + $0x8] sm:$0xff]
    %v122 = vld [vmem:[#allocation8 + $0x10] sm:$0xff]
    %v123 = vld [vmem:[#allocation8 + $0x18] sm:$0xff]
    %v124 = vld [vmem:[#allocation8 + $0x20] sm:$0xff]
    %v125 = vld [vmem:[#allocation8 + $0x28] sm:$0xff]
    %v126 = vld [vmem:[#allocation8 + $0x30] sm:$0xff]
    %v127 = vld [vmem:[#allocation8 + $0x38] sm:$0xff]
    %v128 = vld [vmem:[#allocation8 + $0x40] sm:$0xff]
    %v129 = vld [vmem:[#allocation8 + $0x48] sm:$0xff]
    %v130 = vld [vmem:[#allocation8 + $0x50] sm:$0xff]
    %v131 = vld [vmem:[#allocation8 + $0x58] sm:$0xff]
    %v132 = vld [vmem:[#allocation9] sm:$0x3f]
    %v134 = vlaneseq
    %v135 = vshrl.u32 %v134, 7
    %v136 = vsub.s32 0, %v135
    %v137 = vrot.slane %v132, %v136
    %v138 = vlaneseq
    %v139 = vshrl.u32 %v138, 7
    %v140 = vsub.s32 1, %v139
    %v141 = vrot.slane %v132, %v140
    %v142 = vlaneseq
    %v143 = vshrl.u32 %v142, 7
    %v144 = vsub.s32 2, %v143
    %v145 = vrot.slane %v132, %v144
    %v146 = vlaneseq
    %v147 = vshrl.u32 %v146, 7
    %v148 = vsub.s32 3, %v147
    %v149 = vrot.slane %v132, %v148
    %v150 = vlaneseq
    %v151 = vshrl.u32 %v150, 7
    %v152 = vsub.s32 4, %v151
    %v153 = vrot.slane %v132, %v152
    %v154 = vlaneseq
    %v155 = vshrl.u32 %v154, 7
    %v156 = vsub.s32 5, %v155
    %v157 = vrot.slane %v132, %v156
    %v176 = vunpack.c.l.b16 %v120
    %v177 = vunpack.c.h.b16 %v120
    %v178 = vunpack.c.l.b16 %v121
    %v179 = vunpack.c.h.b16 %v121
    %v180 = vunpack.c.l.b16 %v122
    %v181 = vunpack.c.h.b16 %v122
    %v182 = vunpack.c.l.b16 %v123
    %v183 = vunpack.c.h.b16 %v123
    %v184 = vunpack.c.l.b16 %v124
    %v185 = vunpack.c.h.b16 %v124
    %v186 = vunpack.c.l.b16 %v125
    %v187 = vunpack.c.h.b16 %v125
    %v188 = vunpack.c.l.b16 %v126
    %v189 = vunpack.c.h.b16 %v126
    %v190 = vunpack.c.l.b16 %v127
    %v191 = vunpack.c.h.b16 %v127
    %v192 = vunpack.c.l.b16 %v128
    %v193 = vunpack.c.h.b16 %v128
    %v194 = vunpack.c.l.b16 %v129
    %v195 = vunpack.c.h.b16 %v129
    %v196 = vunpack.c.l.b16 %v130
    %v197 = vunpack.c.h.b16 %v130
    %v198 = vunpack.c.l.b16 %v131
    %v199 = vunpack.c.h.b16 %v131
    %v200 = vpack.c.b16 %v182, %v176
    %v201 = vpack.c.b16 %v183, %v177
    %v202 = vpack.c.b16 %v184, %v178
    %v203 = vpack.c.b16 %v185, %v179
    %v204 = vpack.c.b16 %v186, %v180
    %v205 = vpack.c.b16 %v187, %v181
    %v206 = vpack.c.b16 %v194, %v188
    %v207 = vpack.c.b16 %v195, %v189
    %v208 = vpack.c.b16 %v196, %v190
    %v209 = vpack.c.b16 %v197, %v191
    %v210 = vpack.c.b16 %v198, %v192
    %v211 = vpack.c.b16 %v199, %v193
    %vm224 = vcmask 261120
    %v226 = vsel %vm224, %v114, 0
    %v229 = vsel %vm224, %v119, 0
    %231 = vmatprep.subr.bf16.mxu0 %v201
    %232 = vmatpush1.bf16.msra.mxu0 %v200
    %233 = vmatprep.subr.bf16.mxu0 %v207
    %234 = vmatpush1.bf16.msra.mxu0 %v206
    %235 = vmatprep.subr.bf16.mxu0 0
    %236 = vmatpush1.bf16.msra.mxu0 0
    %237 = vmatprep.subr.bf16.mxu0 0
    %238 = vmatpush1.bf16.msra.mxu0 0
    %239 = vmatprep.subr.bf16.mxu0 0
    %240 = vmatpush1.bf16.msra.mxu0 0
    %241 = vmatprep.subr.bf16.mxu0 0
    %242 = vmatpush1.bf16.msra.mxu0 0
    %243 = vmatprep.subr.bf16.mxu0 0
    %244 = vmatpush1.bf16.msra.mxu0 0
    %245 = vmatprep.subr.bf16.mxu0 0
    %246 = vmatpush1.bf16.msra.mxu0 0
    %247 = vmatprep.subr.bf16.mxu0 0
    %248 = vmatpush1.bf16.msra.mxu0 0
    %249 = vmatprep.subr.bf16.mxu0 0
    %250 = vmatpush1.bf16.msra.mxu0 0
    %251 = vmatprep.subr.bf16.mxu0 0
    %252 = vmatpush1.bf16.msra.mxu0 0
    %253 = vmatprep.subr.bf16.mxu0 0
    %254 = vmatpush1.bf16.msra.mxu0 0
    %255 = vmatprep.subr.bf16.mxu0 0
    %256 = vmatpush1.bf16.msra.mxu0 0
    %257 = vmatprep.subr.bf16.mxu0 0
    %258 = vmatpush1.bf16.msra.mxu0 0
    %259 = vmatprep.subr.bf16.mxu0 0
    %260 = vmatpush1.bf16.msra.mxu0 0
    %261 = vmatprep.subr.bf16.mxu0 0
    %262 = vmatpush1.bf16.msra.mxu0 0
    %263 = vmatprep.mubr.bf16.mxu0 0
    %264 = vmatmul.mubr.bf16.gmra.mrb[0].mxu0 %v226
    %v265 = vpop.f32.mrb[0].mxu0
    %v266 = vadd.f32 %v137, %v265
    %v267 = vpop.f32.mrb[0].mxu0
    %v268 = vpop.f32.mrb[0].mxu0
    %v269 = vadd.f32 %v137, %v268
    %v270 = vpop.f32.mrb[0].mxu0
    %271 = vmatprep.mubr.bf16.mxu0 0
    %272 = vmatmul.mubr.bf16.gmra.mrb[0].mxu0 %v229
    %v273 = vpop.f32.mrb[0].mxu0
    %v274 = vpop.f32.mrb[0].mxu0
    %v275 = vadd.f32 %v141, %v274
    %v276 = vpop.f32.mrb[0].mxu0
    %v277 = vpop.f32.mrb[0].mxu0
    %v278 = vadd.f32 %v141, %v277
    %279 = vdwg.mxu0
    %280 = vmatprep.subr.bf16.mxu0 %v203
    %281 = vmatpush1.bf16.msra.mxu0 %v202
    %282 = vmatprep.subr.bf16.mxu0 %v209
    %283 = vmatpush1.bf16.msra.mxu0 %v208
    %284 = vmatprep.subr.bf16.mxu0 0
    %285 = vmatpush1.bf16.msra.mxu0 0
    %286 = vmatprep.subr.bf16.mxu0 0
    %287 = vmatpush1.bf16.msra.mxu0 0
    %288 = vmatprep.subr.bf16.mxu0 0
    %289 = vmatpush1.bf16.msra.mxu0 0
    %290 = vmatprep.subr.bf16.mxu0 0
    %291 = vmatpush1.bf16.msra.mxu0 0
    %292 = vmatprep.subr.bf16.mxu0 0
    %293 = vmatpush1.bf16.msra.mxu0 0
    %294 = vmatprep.subr.bf16.mxu0 0
    %295 = vmatpush1.bf16.msra.mxu0 0
    %296 = vmatprep.subr.bf16.mxu0 0
    %297 = vmatpush1.bf16.msra.mxu0 0
    %298 = vmatprep.subr.bf16.mxu0 0
    %299 = vmatpush1.bf16.msra.mxu0 0
    %300 = vmatprep.subr.bf16.mxu0 0
    %301 = vmatpush1.bf16.msra.mxu0 0
    %302 = vmatprep.subr.bf16.mxu0 0
    %303 = vmatpush1.bf16.msra.mxu0 0
    %304 = vmatprep.subr.bf16.mxu0 0
    %305 = vmatpush1.bf16.msra.mxu0 0
    %306 = vmatprep.subr.bf16.mxu0 0
    %307 = vmatpush1.bf16.msra.mxu0 0
    %308 = vmatprep.subr.bf16.mxu0 0
    %309 = vmatpush1.bf16.msra.mxu0 0
    %310 = vmatprep.subr.bf16.mxu0 0
    %311 = vmatpush1.bf16.msra.mxu0 0
    %312 = vmatprep.mubr.bf16.mxu0 0
    %313 = vmatmul.mubr.bf16.gmra.mrb[0].mxu0 %v226
    %v314 = vpop.f32.mrb[0].mxu0
    %v315 = vpop.f32.mrb[0].mxu0
    %v316 = vadd.f32 %v149, %v315
    %v317 = vpop.f32.mrb[0].mxu0
    %v318 = vpop.f32.mrb[0].mxu0
    %v319 = vadd.f32 %v149, %v318
    %320 = vmatprep.mubr.bf16.mxu0 0
    %321 = vmatmul.mubr.bf16.gmra.mrb[0].mxu0 %v229
    %v322 = vpop.f32.mrb[0].mxu0
    %v323 = vadd.f32 %v145, %v322
    %v324 = vpop.f32.mrb[0].mxu0
    %v325 = vpop.f32.mrb[0].mxu0
    %v326 = vadd.f32 %v145, %v325
    %v327 = vpop.f32.mrb[0].mxu0
    %328 = vdwg.mxu0
    %329 = vmatprep.subr.bf16.mxu0 %v205
    %330 = vmatpush1.bf16.msra.mxu0 %v204
    %331 = vmatprep.subr.bf16.mxu0 %v211
    %332 = vmatpush1.bf16.msra.mxu0 %v210
    %333 = vmatprep.subr.bf16.mxu0 0
    %334 = vmatpush1.bf16.msra.mxu0 0
    %335 = vmatprep.subr.bf16.mxu0 0
    %336 = vmatpush1.bf16.msra.mxu0 0
    %337 = vmatprep.subr.bf16.mxu0 0
    %338 = vmatpush1.bf16.msra.mxu0 0
    %339 = vmatprep.subr.bf16.mxu0 0
    %340 = vmatpush1.bf16.msra.mxu0 0
    %341 = vmatprep.subr.bf16.mxu0 0
    %342 = vmatpush1.bf16.msra.mxu0 0
    %343 = vmatprep.subr.bf16.mxu0 0
    %344 = vmatpush1.bf16.msra.mxu0 0
    %345 = vmatprep.subr.bf16.mxu0 0
    %346 = vmatpush1.bf16.msra.mxu0 0
    %347 = vmatprep.subr.bf16.mxu0 0
    %348 = vmatpush1.bf16.msra.mxu0 0
    %349 = vmatprep.subr.bf16.mxu0 0
    %350 = vmatpush1.bf16.msra.mxu0 0
    %351 = vmatprep.subr.bf16.mxu0 0
    %352 = vmatpush1.bf16.msra.mxu0 0
    %353 = vmatprep.subr.bf16.mxu0 0
    %354 = vmatpush1.bf16.msra.mxu0 0
    %355 = vmatprep.subr.bf16.mxu0 0
    %356 = vmatpush1.bf16.msra.mxu0 0
    %357 = vmatprep.subr.bf16.mxu0 0
    %358 = vmatpush1.bf16.msra.mxu0 0
    %359 = vmatprep.subr.bf16.mxu0 0
    %360 = vmatpush1.bf16.msra.mxu0 0
    %361 = vmatprep.mubr.bf16.mxu0 0
    %362 = vmatmul.mubr.bf16.gmra.mrb[0].mxu0 %v226
    %v363 = vpop.f32.mrb[0].mxu0
    %v364 = vpop.f32.mrb[0].mxu0
    %v365 = vpop.f32.mrb[0].mxu0
    %v366 = vpop.f32.mrb[0].mxu0
    %367 = vmatprep.mubr.bf16.mxu0 0
    %368 = vmatmul.mubr.bf16.gmra.mrb[0].mxu0 %v229
    %v369 = vpop.f32.mrb[0].mxu0
    %v370 = vadd.f32 %v153, %v369
    %v371 = vpop.f32.mrb[0].mxu0
    %v372 = vadd.f32 %v157, %v371
    %v373 = vpop.f32.mrb[0].mxu0
    %v374 = vadd.f32 %v153, %v373
    %v375 = vpop.f32.mrb[0].mxu0
    %v376 = vadd.f32 %v157, %v375
    %377 = vdwg.mxu0
    %v378 = vld [vmem:[%s2] sm:$0xff]
    %v379 = vld [vmem:[%s2 + $0x8] sm:$0xff]
    %vm380 = vcmp.gt.f32.partialorder %v378, 0.0
    %vm381 = vcmp.gt.f32.partialorder %v379, 0.0
    %v382 = vpack.c.bf16 %v269, %v266
    %v384 = vunpack.c.l.b16 %v382
    %v385 = vunpack.c.h.b16 %v382
    %v386 = vpack.c.b16 %v384, %v384
    %v387 = vpack.c.b16 %v385, %v385
    %v390 = vpack.c.bf16 %v278, %v275
    %v392 = vunpack.c.l.b16 %v390
    %v393 = vunpack.c.h.b16 %v390
    %v394 = vpack.c.b16 %v392, %v392
    %v395 = vpack.c.b16 %v393, %v393
    %v398 = vpack.c.bf16 %v326, %v323
    %v400 = vunpack.c.l.b16 %v398
    %v401 = vunpack.c.h.b16 %v398
    %v402 = vpack.c.b16 %v400, %v400
    %v403 = vpack.c.b16 %v401, %v401
    %404 = vmatprep.subr.bf16.mxu0 0
    %405 = vmatpush1.bf16.xpose.msra.mxu0 %v394
    %406 = vmatprep.subr.bf16.mxu0 0
    %407 = vmatpush1.bf16.xpose.msra.mxu0 0
    %408 = vmatprep.subr.bf16.mxu0 0
    %409 = vmatpush1.bf16.xpose.msra.mxu0 0
    %410 = vmatprep.subr.bf16.mxu0 0
    %411 = vmatpush1.bf16.xpose.msra.mxu0 0
    %412 = vmatprep.subr.bf16.mxu0 0
    %413 = vmatpush1.bf16.xpose.msra.mxu0 0
    %414 = vmatprep.subr.bf16.mxu0 0
    %415 = vmatpush1.bf16.xpose.msra.mxu0 0
    %416 = vmatprep.subr.bf16.mxu0 0
    %417 = vmatpush1.bf16.xpose.msra.mxu0 0
    %418 = vmatprep.subr.bf16.mxu0 0
    %419 = vmatpush1.bf16.xpose.msra.mxu0 0
    %420 = vmatprep.subr.bf16.mxu0 0
    %421 = vmatpush1.bf16.xpose.msra.mxu0 0
    %422 = vmatprep.subr.bf16.mxu0 0
    %423 = vmatpush1.bf16.xpose.msra.mxu0 0
    %424 = vmatprep.subr.bf16.mxu0 0
    %425 = vmatpush1.bf16.xpose.msra.mxu0 0
    %426 = vmatprep.subr.bf16.mxu0 0
    %427 = vmatpush1.bf16.xpose.msra.mxu0 0
    %428 = vmatprep.subr.bf16.mxu0 0
    %429 = vmatpush1.bf16.xpose.msra.mxu0 0
    %430 = vmatprep.subr.bf16.mxu0 0
    %431 = vmatpush1.bf16.xpose.msra.mxu0 0
    %432 = vmatprep.subr.bf16.mxu0 0
    %433 = vmatpush1.bf16.xpose.msra.mxu0 0
    %434 = vmatprep.subr.bf16.mxu0 0
    %435 = vmatpush1.bf16.xpose.msra.mxu0 0
    %436 = vmatprep.mubr.bf16.mxu0 0
    %437 = vmatmul.mubr.bf16.gmra.mrb[0].mxu0 %v386
    %v438 = vpop.f32.mrb[0].mxu0
    %v439 = vadd.f32 0.0, %v438
    %v440 = vpop.f32.mrb[0].mxu0
    %v441 = vpop.f32.mrb[0].mxu0
    %v442 = vpop.f32.mrb[0].mxu0
    %443 = vdwg.mxu0
    %444 = vmatprep.subr.bf16.mxu0 0
    %445 = vmatpush1.bf16.xpose.msra.mxu0 %v395
    %446 = vmatprep.subr.bf16.mxu0 0
    %447 = vmatpush1.bf16.xpose.msra.mxu0 0
    %448 = vmatprep.subr.bf16.mxu0 0
    %449 = vmatpush1.bf16.xpose.msra.mxu0 0
    %450 = vmatprep.subr.bf16.mxu0 0
    %451 = vmatpush1.bf16.xpose.msra.mxu0 0
    %452 = vmatprep.subr.bf16.mxu0 0
    %453 = vmatpush1.bf16.xpose.msra.mxu0 0
    %454 = vmatprep.subr.bf16.mxu0 0
    %455 = vmatpush1.bf16.xpose.msra.mxu0 0
    %456 = vmatprep.subr.bf16.mxu0 0
    %457 = vmatpush1.bf16.xpose.msra.mxu0 0
    %458 = vmatprep.subr.bf16.mxu0 0
    %459 = vmatpush1.bf16.xpose.msra.mxu0 0
    %460 = vmatprep.subr.bf16.mxu0 0
    %461 = vmatpush1.bf16.xpose.msra.mxu0 0
    %462 = vmatprep.subr.bf16.mxu0 0
    %463 = vmatpush1.bf16.xpose.msra.mxu0 0
    %464 = vmatprep.subr.bf16.mxu0 0
    %465 = vmatpush1.bf16.xpose.msra.mxu0 0
    %466 = vmatprep.subr.bf16.mxu0 0
    %467 = vmatpush1.bf16.xpose.msra.mxu0 0
    %468 = vmatprep.subr.bf16.mxu0 0
    %469 = vmatpush1.bf16.xpose.msra.mxu0 0
    %470 = vmatprep.subr.bf16.mxu0 0
    %471 = vmatpush1.bf16.xpose.msra.mxu0 0
    %472 = vmatprep.subr.bf16.mxu0 0
    %473 = vmatpush1.bf16.xpose.msra.mxu0 0
    %474 = vmatprep.subr.bf16.mxu0 0
    %475 = vmatpush1.bf16.xpose.msra.mxu0 0
    %476 = vmatprep.mubr.bf16.mxu0 0
    %477 = vmatmul.mubr.bf16.gmra.mrb[0].mxu0 %v387
    %v478 = vpop.f32.mrb[0].mxu0
    %v479 = vadd.f32 0.0, %v478
    %v480 = vpop.f32.mrb[0].mxu0
    %v481 = vpop.f32.mrb[0].mxu0
    %v482 = vpop.f32.mrb[0].mxu0
    %483 = vdwg.mxu0
    %v484 = vsel %vm380, %v439, -1e+30
    %v485 = vsel %vm381, %v479, -1e+30
    %vm486 = vcmask 64512
    %v487 = vsel %vm486, %v484, -inf
    %488 = vmax.xlane.f32.xlu0 %v487
    %v489 = vpop.xlane.xlu0 %488
    %v490 = vsel %vm486, %v485, -inf
    %491 = vmax.xlane.f32.xlu0 %v490
    %v492 = vpop.xlane.xlu0 %491
    %v493 = vsub.f32 %v484, %v489
    %v494 = vsub.f32 %v485, %v492
    %v495 = vmul.f32 %v493, 1.442695
    %v496 = vpow.pop %v495
    %v497 = vmul.f32 %v494, 1.442695
    %v498 = vpow.pop %v497
    %v499 = vsel %vm486, %v496, 0.0
    %500 = vadd.xlane.f32.xlu0 %v499
    %v501 = vpop.xlane.xlu0 %500
    %v502 = vsel %vm486, %v498, 0.0
    %503 = vadd.xlane.f32.xlu0 %v502
    %v504 = vpop.xlane.xlu0 %503
    %v505 = vrcp.pop %v501
    %v506 = vrcp.pop %v504
    %v507 = vmul.f32 %v496, %v505
    %v508 = vmul.f32 %v498, %v506
    %v509 = vpack.c.bf16 %v507, %v507
    %v510 = vpack.c.bf16 %v508, %v508
    %v512 = vsel %vm486, %v509, 0
    %vm514 = vcmask 1043456
    %v516 = vsel %vm514, %v402, 0
    %518 = vmatprep.subr.bf16.mxu0 0
    %519 = vmatpush1.bf16.msra.mxu0 %v516
    %520 = vmatprep.subr.bf16.mxu0 0
    %521 = vmatpush1.bf16.msra.mxu0 0
    %522 = vmatprep.subr.bf16.mxu0 0
    %523 = vmatpush1.bf16.msra.mxu0 0
    %524 = vmatprep.subr.bf16.mxu0 0
    %525 = vmatpush1.bf16.msra.mxu0 0
    %526 = vmatprep.subr.bf16.mxu0 0
    %527 = vmatpush1.bf16.msra.mxu0 0
    %528 = vmatprep.subr.bf16.mxu0 0
    %529 = vmatpush1.bf16.msra.mxu0 0
    %530 = vmatprep.subr.bf16.mxu0 0
    %531 = vmatpush1.bf16.msra.mxu0 0
    %532 = vmatprep.subr.bf16.mxu0 0
    %533 = vmatpush1.bf16.msra.mxu0 0
    %534 = vmatprep.subr.bf16.mxu0 0
    %535 = vmatpush1.bf16.msra.mxu0 0
    %536 = vmatprep.subr.bf16.mxu0 0
    %537 = vmatpush1.bf16.msra.mxu0 0
    %538 = vmatprep.subr.bf16.mxu0 0
    %539 = vmatpush1.bf16.msra.mxu0 0
    %540 = vmatprep.subr.bf16.mxu0 0
    %541 = vmatpush1.bf16.msra.mxu0 0
    %542 = vmatprep.subr.bf16.mxu0 0
    %543 = vmatpush1.bf16.msra.mxu0 0
    %544 = vmatprep.subr.bf16.mxu0 0
    %545 = vmatpush1.bf16.msra.mxu0 0
    %546 = vmatprep.subr.bf16.mxu0 0
    %547 = vmatpush1.bf16.msra.mxu0 0
    %548 = vmatprep.subr.bf16.mxu0 0
    %549 = vmatpush1.bf16.msra.mxu0 0
    %550 = vmatprep.mubr.bf16.mxu0 0
    %551 = vmatmul.mubr.bf16.gmra.mrb[0].mxu0 %v512
    %v552 = vpop.f32.mrb[0].mxu0
    %v553 = vadd.f32 0.0, %v552
    %v554 = vpop.f32.mrb[0].mxu0
    %v555 = vpop.f32.mrb[0].mxu0
    %v556 = vpop.f32.mrb[0].mxu0
    %557 = vdwg.mxu0
    %v559 = vsel %vm486, %v510, 0
    %v562 = vsel %vm514, %v403, 0
    %564 = vmatprep.subr.bf16.mxu0 0
    %565 = vmatpush1.bf16.msra.mxu0 %v562
    %566 = vmatprep.subr.bf16.mxu0 0
    %567 = vmatpush1.bf16.msra.mxu0 0
    %568 = vmatprep.subr.bf16.mxu0 0
    %569 = vmatpush1.bf16.msra.mxu0 0
    %570 = vmatprep.subr.bf16.mxu0 0
    %571 = vmatpush1.bf16.msra.mxu0 0
    %572 = vmatprep.subr.bf16.mxu0 0
    %573 = vmatpush1.bf16.msra.mxu0 0
    %574 = vmatprep.subr.bf16.mxu0 0
    %575 = vmatpush1.bf16.msra.mxu0 0
    %576 = vmatprep.subr.bf16.mxu0 0
    %577 = vmatpush1.bf16.msra.mxu0 0
    %578 = vmatprep.subr.bf16.mxu0 0
    %579 = vmatpush1.bf16.msra.mxu0 0
    %580 = vmatprep.subr.bf16.mxu0 0
    %581 = vmatpush1.bf16.msra.mxu0 0
    %582 = vmatprep.subr.bf16.mxu0 0
    %583 = vmatpush1.bf16.msra.mxu0 0
    %584 = vmatprep.subr.bf16.mxu0 0
    %585 = vmatpush1.bf16.msra.mxu0 0
    %586 = vmatprep.subr.bf16.mxu0 0
    %587 = vmatpush1.bf16.msra.mxu0 0
    %588 = vmatprep.subr.bf16.mxu0 0
    %589 = vmatpush1.bf16.msra.mxu0 0
    %590 = vmatprep.subr.bf16.mxu0 0
    %591 = vmatpush1.bf16.msra.mxu0 0
    %592 = vmatprep.subr.bf16.mxu0 0
    %593 = vmatpush1.bf16.msra.mxu0 0
    %594 = vmatprep.subr.bf16.mxu0 0
    %595 = vmatpush1.bf16.msra.mxu0 0
    %596 = vmatprep.mubr.bf16.mxu0 0
    %597 = vmatmul.mubr.bf16.gmra.mrb[0].mxu0 %v559
    %v598 = vpop.f32.mrb[0].mxu0
    %v599 = vadd.f32 0.0, %v598
    %v600 = vpop.f32.mrb[0].mxu0
    %v601 = vpop.f32.mrb[0].mxu0
    %v602 = vpop.f32.mrb[0].mxu0
    %603 = vdwg.mxu0
    %v604 = vpack.c.bf16 %v599, %v553
    %v605 = vld [vmem:[#allocation11] sm:$0xff]
    %v606 = vld [vmem:[#allocation11 + $0x8] sm:$0xff]
    %v607 = vld [vmem:[#allocation11 + $0x10] sm:$0xff]
    %v608 = vld [vmem:[#allocation11 + $0x18] sm:$0xff]
    %v609 = vld [vmem:[#allocation11 + $0x20] sm:$0xff]
    %v610 = vld [vmem:[#allocation11 + $0x28] sm:$0xff]
    %v611 = vld [vmem:[#allocation11 + $0x30] sm:$0xff]
    %v612 = vld [vmem:[#allocation11 + $0x38] sm:$0xff]
    %v613 = vld [vmem:[#allocation11 + $0x40] sm:$0xff]
    %v614 = vld [vmem:[#allocation11 + $0x48] sm:$0xff]
    %v615 = vld [vmem:[#allocation11 + $0x50] sm:$0xff]
    %v616 = vld [vmem:[#allocation11 + $0x58] sm:$0xff]
    %v617 = vld [vmem:[#allocation11 + $0x60] sm:$0xff]
    %v618 = vld [vmem:[#allocation11 + $0x68] sm:$0xff]
    %v619 = vld [vmem:[#allocation11 + $0x70] sm:$0xff]
    %v620 = vld [vmem:[#allocation11 + $0x78] sm:$0xff]
    %v621 = vpack.c.bf16 %v319, %v316
    %v623 = vunpack.c.l.b16 %v621
    %v624 = vunpack.c.h.b16 %v621
    %v625 = vpack.c.b16 %v623, %v623
    %v626 = vpack.c.b16 %v624, %v624
    %v629 = vpack.c.bf16 %v374, %v370
    %v631 = vunpack.c.l.b16 %v629
    %v632 = vunpack.c.h.b16 %v629
    %v633 = vpack.c.b16 %v631, %v631
    %v634 = vpack.c.b16 %v632, %v632
    %v637 = vpack.c.bf16 %v376, %v372
    %v639 = vunpack.c.l.b16 %v637
    %v640 = vunpack.c.h.b16 %v637
    %v641 = vpack.c.b16 %v639, %v639
    %v642 = vpack.c.b16 %v640, %v640
    %643 = vmatprep.subr.bf16.mxu0 0
    %644 = vmatpush1.bf16.xpose.msra.mxu0 %v633
    %645 = vmatprep.subr.bf16.mxu0 0
    %646 = vmatpush1.bf16.xpose.msra.mxu0 0
    %647 = vmatprep.subr.bf16.mxu0 0
    %648 = vmatpush1.bf16.xpose.msra.mxu0 0
    %649 = vmatprep.subr.bf16.mxu0 0
    %650 = vmatpush1.bf16.xpose.msra.mxu0 0
    %651 = vmatprep.subr.bf16.mxu0 0
    %652 = vmatpush1.bf16.xpose.msra.mxu0 0
    %653 = vmatprep.subr.bf16.mxu0 0
    %654 = vmatpush1.bf16.xpose.msra.mxu0 0
    %655 = vmatprep.subr.bf16.mxu0 0
    %656 = vmatpush1.bf16.xpose.msra.mxu0 0
    %657 = vmatprep.subr.bf16.mxu0 0
    %658 = vmatpush1.bf16.xpose.msra.mxu0 0
    %659 = vmatprep.subr.bf16.mxu0 0
    %660 = vmatpush1.bf16.xpose.msra.mxu0 0
    %661 = vmatprep.subr.bf16.mxu0 0
    %662 = vmatpush1.bf16.xpose.msra.mxu0 0
    %663 = vmatprep.subr.bf16.mxu0 0
    %664 = vmatpush1.bf16.xpose.msra.mxu0 0
    %665 = vmatprep.subr.bf16.mxu0 0
    %666 = vmatpush1.bf16.xpose.msra.mxu0 0
    %667 = vmatprep.subr.bf16.mxu0 0
    %668 = vmatpush1.bf16.xpose.msra.mxu0 0
    %669 = vmatprep.subr.bf16.mxu0 0
    %670 = vmatpush1.bf16.xpose.msra.mxu0 0
    %671 = vmatprep.subr.bf16.mxu0 0
    %672 = vmatpush1.bf16.xpose.msra.mxu0 0
    %673 = vmatprep.subr.bf16.mxu0 0
    %674 = vmatpush1.bf16.xpose.msra.mxu0 0
    %675 = vmatprep.mubr.bf16.mxu0 0
    %676 = vmatmul.mubr.bf16.gmra.mrb[0].mxu0 %v625
    %v677 = vpop.f32.mrb[0].mxu0
    %v678 = vadd.f32 0.0, %v677
    %v679 = vpop.f32.mrb[0].mxu0
    %v680 = vpop.f32.mrb[0].mxu0
    %v681 = vpop.f32.mrb[0].mxu0
    %682 = vdwg.mxu0
    %683 = vmatprep.subr.bf16.mxu0 0
    %684 = vmatpush1.bf16.xpose.msra.mxu0 %v634
    %685 = vmatprep.subr.bf16.mxu0 0
    %686 = vmatpush1.bf16.xpose.msra.mxu0 0
    %687 = vmatprep.subr.bf16.mxu0 0
    %688 = vmatpush1.bf16.xpose.msra.mxu0 0
    %689 = vmatprep.subr.bf16.mxu0 0
    %690 = vmatpush1.bf16.xpose.msra.mxu0 0
    %691 = vmatprep.subr.bf16.mxu0 0
    %692 = vmatpush1.bf16.xpose.msra.mxu0 0
    %693 = vmatprep.subr.bf16.mxu0 0
    %694 = vmatpush1.bf16.xpose.msra.mxu0 0
    %695 = vmatprep.subr.bf16.mxu0 0
    %696 = vmatpush1.bf16.xpose.msra.mxu0 0
    %697 = vmatprep.subr.bf16.mxu0 0
    %698 = vmatpush1.bf16.xpose.msra.mxu0 0
    %699 = vmatprep.subr.bf16.mxu0 0
    %700 = vmatpush1.bf16.xpose.msra.mxu0 0
    %701 = vmatprep.subr.bf16.mxu0 0
    %702 = vmatpush1.bf16.xpose.msra.mxu0 0
    %703 = vmatprep.subr.bf16.mxu0 0
    %704 = vmatpush1.bf16.xpose.msra.mxu0 0
    %705 = vmatprep.subr.bf16.mxu0 0
    %706 = vmatpush1.bf16.xpose.msra.mxu0 0
    %707 = vmatprep.subr.bf16.mxu0 0
    %708 = vmatpush1.bf16.xpose.msra.mxu0 0
    %709 = vmatprep.subr.bf16.mxu0 0
    %710 = vmatpush1.bf16.xpose.msra.mxu0 0
    %711 = vmatprep.subr.bf16.mxu0 0
    %712 = vmatpush1.bf16.xpose.msra.mxu0 0
    %713 = vmatprep.subr.bf16.mxu0 0
    %714 = vmatpush1.bf16.xpose.msra.mxu0 0
    %715 = vmatprep.mubr.bf16.mxu0 0
    %716 = vmatmul.mubr.bf16.gmra.mrb[0].mxu0 %v626
    %v717 = vpop.f32.mrb[0].mxu0
    %v718 = vadd.f32 0.0, %v717
    %v719 = vpop.f32.mrb[0].mxu0
    %v720 = vpop.f32.mrb[0].mxu0
    %v721 = vpop.f32.mrb[0].mxu0
    %722 = vdwg.mxu0
    %v723 = vsel %vm380, %v678, -1e+30
    %v724 = vsel %vm381, %v718, -1e+30
    %v725 = vsel %vm486, %v723, -inf
    %726 = vmax.xlane.f32.xlu0 %v725
    %v727 = vpop.xlane.xlu0 %726
    %v728 = vsel %vm486, %v724, -inf
    %729 = vmax.xlane.f32.xlu0 %v728
    %v730 = vpop.xlane.xlu0 %729
    %v731 = vsub.f32 %v723, %v727
    %v732 = vsub.f32 %v724, %v730
    %v733 = vmul.f32 %v731, 1.442695
    %v734 = vpow.pop %v733
    %v735 = vmul.f32 %v732, 1.442695
    %v736 = vpow.pop %v735
    %v737 = vsel %vm486, %v734, 0.0
    %738 = vadd.xlane.f32.xlu0 %v737
    %v739 = vpop.xlane.xlu0 %738
    %v740 = vsel %vm486, %v736, 0.0
    %741 = vadd.xlane.f32.xlu0 %v740
    %v742 = vpop.xlane.xlu0 %741
    %v743 = vrcp.pop %v739
    %v744 = vrcp.pop %v742
    %v745 = vmul.f32 %v734, %v743
    %v746 = vmul.f32 %v736, %v744
    %v747 = vpack.c.bf16 %v745, %v745
    %v748 = vpack.c.bf16 %v746, %v746
    %v750 = vsel %vm486, %v747, 0
    %v753 = vsel %vm514, %v641, 0
    %755 = vmatprep.subr.bf16.mxu0 0
    %756 = vmatpush1.bf16.msra.mxu0 %v753
    %757 = vmatprep.subr.bf16.mxu0 0
    %758 = vmatpush1.bf16.msra.mxu0 0
    %759 = vmatprep.subr.bf16.mxu0 0
    %760 = vmatpush1.bf16.msra.mxu0 0
    %761 = vmatprep.subr.bf16.mxu0 0
    %762 = vmatpush1.bf16.msra.mxu0 0
    %763 = vmatprep.subr.bf16.mxu0 0
    %764 = vmatpush1.bf16.msra.mxu0 0
    %765 = vmatprep.subr.bf16.mxu0 0
    %766 = vmatpush1.bf16.msra.mxu0 0
    %767 = vmatprep.subr.bf16.mxu0 0
    %768 = vmatpush1.bf16.msra.mxu0 0
    %769 = vmatprep.subr.bf16.mxu0 0
    %770 = vmatpush1.bf16.msra.mxu0 0
    %771 = vmatprep.subr.bf16.mxu0 0
    %772 = vmatpush1.bf16.msra.mxu0 0
    %773 = vmatprep.subr.bf16.mxu0 0
    %774 = vmatpush1.bf16.msra.mxu0 0
    %775 = vmatprep.subr.bf16.mxu0 0
    %776 = vmatpush1.bf16.msra.mxu0 0
    %777 = vmatprep.subr.bf16.mxu0 0
    %778 = vmatpush1.bf16.msra.mxu0 0
    %779 = vmatprep.subr.bf16.mxu0 0
    %780 = vmatpush1.bf16.msra.mxu0 0
    %781 = vmatprep.subr.bf16.mxu0 0
    %782 = vmatpush1.bf16.msra.mxu0 0
    %783 = vmatprep.subr.bf16.mxu0 0
    %784 = vmatpush1.bf16.msra.mxu0 0
    %785 = vmatprep.subr.bf16.mxu0 0
    %786 = vmatpush1.bf16.msra.mxu0 0
    %787 = vmatprep.mubr.bf16.mxu0 0
    %788 = vmatmul.mubr.bf16.gmra.mrb[0].mxu0 %v750
    %v789 = vpop.f32.mrb[0].mxu0
    %v790 = vadd.f32 0.0, %v789
    %v791 = vpop.f32.mrb[0].mxu0
    %v792 = vpop.f32.mrb[0].mxu0
    %v793 = vpop.f32.mrb[0].mxu0
    %794 = vdwg.mxu0
    %v796 = vsel %vm486, %v748, 0
    %v799 = vsel %vm514, %v642, 0
    %801 = vmatprep.subr.bf16.mxu0 0
    %802 = vmatpush1.bf16.msra.mxu0 %v799
    %803 = vmatprep.subr.bf16.mxu0 0
    %804 = vmatpush1.bf16.msra.mxu0 0
    %805 = vmatprep.subr.bf16.mxu0 0
    %806 = vmatpush1.bf16.msra.mxu0 0
    %807 = vmatprep.subr.bf16.mxu0 0
    %808 = vmatpush1.bf16.msra.mxu0 0
    %809 = vmatprep.subr.bf16.mxu0 0
    %810 = vmatpush1.bf16.msra.mxu0 0
    %811 = vmatprep.subr.bf16.mxu0 0
    %812 = vmatpush1.bf16.msra.mxu0 0
    %813 = vmatprep.subr.bf16.mxu0 0
    %814 = vmatpush1.bf16.msra.mxu0 0
    %815 = vmatprep.subr.bf16.mxu0 0
    %816 = vmatpush1.bf16.msra.mxu0 0
    %817 = vmatprep.subr.bf16.mxu0 0
    %818 = vmatpush1.bf16.msra.mxu0 0
    %819 = vmatprep.subr.bf16.mxu0 0
    %820 = vmatpush1.bf16.msra.mxu0 0
    %821 = vmatprep.subr.bf16.mxu0 0
    %822 = vmatpush1.bf16.msra.mxu0 0
    %823 = vmatprep.subr.bf16.mxu0 0
    %824 = vmatpush1.bf16.msra.mxu0 0
    %825 = vmatprep.subr.bf16.mxu0 0
    %826 = vmatpush1.bf16.msra.mxu0 0
    %827 = vmatprep.subr.bf16.mxu0 0
    %828 = vmatpush1.bf16.msra.mxu0 0
    %829 = vmatprep.subr.bf16.mxu0 0
    %830 = vmatpush1.bf16.msra.mxu0 0
    %831 = vmatprep.subr.bf16.mxu0 0
    %832 = vmatpush1.bf16.msra.mxu0 0
    %833 = vmatprep.mubr.bf16.mxu0 0
    %834 = vmatmul.mubr.bf16.gmra.mrb[0].mxu0 %v796
    %v835 = vpop.f32.mrb[0].mxu0
    %v836 = vadd.f32 0.0, %v835
    %v837 = vpop.f32.mrb[0].mxu0
    %v838 = vpop.f32.mrb[0].mxu0
    %v839 = vpop.f32.mrb[0].mxu0
    %840 = vdwg.mxu0
    %v841 = vpack.c.bf16 %v836, %v790
    %v842 = vld [vmem:[#allocation11 + $0x80] sm:$0xff]
    %v843 = vld [vmem:[#allocation11 + $0x88] sm:$0xff]
    %v844 = vld [vmem:[#allocation11 + $0x90] sm:$0xff]
    %v845 = vld [vmem:[#allocation11 + $0x98] sm:$0xff]
    %v846 = vld [vmem:[#allocation11 + $0xa0] sm:$0xff]
    %v847 = vld [vmem:[#allocation11 + $0xa8] sm:$0xff]
    %v848 = vld [vmem:[#allocation11 + $0xb0] sm:$0xff]
    %v849 = vld [vmem:[#allocation11 + $0xb8] sm:$0xff]
    %v850 = vld [vmem:[#allocation11 + $0xc0] sm:$0xff]
    %v851 = vld [vmem:[#allocation11 + $0xc8] sm:$0xff]
    %v852 = vld [vmem:[#allocation11 + $0xd0] sm:$0xff]
    %v853 = vld [vmem:[#allocation11 + $0xd8] sm:$0xff]
    %v854 = vld [vmem:[#allocation11 + $0xe0] sm:$0xff]
    %v855 = vld [vmem:[#allocation11 + $0xe8] sm:$0xff]
    %v856 = vld [vmem:[#allocation11 + $0xf0] sm:$0xff]
    %v857 = vld [vmem:[#allocation11 + $0xf8] sm:$0xff]
    %v874 = vunpack.c.l.b16 %v842
    %v875 = vunpack.c.h.b16 %v842
    %v876 = vunpack.c.l.b16 %v843
    %v877 = vunpack.c.h.b16 %v843
    %v878 = vunpack.c.l.b16 %v844
    %v879 = vunpack.c.h.b16 %v844
    %v880 = vunpack.c.l.b16 %v845
    %v881 = vunpack.c.h.b16 %v845
    %v882 = vunpack.c.l.b16 %v846
    %v883 = vunpack.c.h.b16 %v846
    %v884 = vunpack.c.l.b16 %v847
    %v885 = vunpack.c.h.b16 %v847
    %v886 = vunpack.c.l.b16 %v848
    %v887 = vunpack.c.h.b16 %v848
    %v888 = vunpack.c.l.b16 %v849
    %v889 = vunpack.c.h.b16 %v849
    %v890 = vunpack.c.l.b16 %v850
    %v891 = vunpack.c.h.b16 %v850
    %v892 = vunpack.c.l.b16 %v851
    %v893 = vunpack.c.h.b16 %v851
    %v894 = vunpack.c.l.b16 %v852
    %v895 = vunpack.c.h.b16 %v852
    %v896 = vunpack.c.l.b16 %v853
    %v897 = vunpack.c.h.b16 %v853
    %v898 = vunpack.c.l.b16 %v854
    %v899 = vunpack.c.h.b16 %v854
    %v900 = vunpack.c.l.b16 %v855
    %v901 = vunpack.c.h.b16 %v855
    %v902 = vunpack.c.l.b16 %v856
    %v903 = vunpack.c.h.b16 %v856
    %v904 = vunpack.c.l.b16 %v857
    %v905 = vunpack.c.h.b16 %v857
    %v906 = vpack.c.b16 %v876, %v874
    %v907 = vpack.c.b16 %v877, %v875
    %v908 = vpack.c.b16 %v880, %v878
    %v909 = vpack.c.b16 %v881, %v879
    %v910 = vpack.c.b16 %v884, %v882
    %v911 = vpack.c.b16 %v885, %v883
    %v912 = vpack.c.b16 %v888, %v886
    %v913 = vpack.c.b16 %v889, %v887
    %v914 = vpack.c.b16 %v892, %v890
    %v915 = vpack.c.b16 %v893, %v891
    %v916 = vpack.c.b16 %v896, %v894
    %v917 = vpack.c.b16 %v897, %v895
    %v918 = vpack.c.b16 %v900, %v898
    %v919 = vpack.c.b16 %v901, %v899
    %v920 = vpack.c.b16 %v904, %v902
    %v921 = vpack.c.b16 %v905, %v903
    %938 = vmatprep.subr.bf16.mxu0 %v907
    %939 = vmatpush1.bf16.msra.mxu0 %v906
    %940 = vmatprep.subr.bf16.mxu0 %v909
    %941 = vmatpush1.bf16.msra.mxu0 %v908
    %942 = vmatprep.subr.bf16.mxu0 %v911
    %943 = vmatpush1.bf16.msra.mxu0 %v910
    %944 = vmatprep.subr.bf16.mxu0 %v913
    %945 = vmatpush1.bf16.msra.mxu0 %v912
    %946 = vmatprep.subr.bf16.mxu0 %v915
    %947 = vmatpush1.bf16.msra.mxu0 %v914
    %948 = vmatprep.subr.bf16.mxu0 %v917
    %949 = vmatpush1.bf16.msra.mxu0 %v916
    %950 = vmatprep.subr.bf16.mxu0 %v919
    %951 = vmatpush1.bf16.msra.mxu0 %v918
    %952 = vmatprep.subr.bf16.mxu0 %v921
    %953 = vmatpush1.bf16.msra.mxu0 %v920
    %954 = vmatprep.subr.bf16.mxu0 0
    %955 = vmatpush1.bf16.msra.mxu0 0
    %956 = vmatprep.subr.bf16.mxu0 0
    %957 = vmatpush1.bf16.msra.mxu0 0
    %958 = vmatprep.subr.bf16.mxu0 0
    %959 = vmatpush1.bf16.msra.mxu0 0
    %960 = vmatprep.subr.bf16.mxu0 0
    %961 = vmatpush1.bf16.msra.mxu0 0
    %962 = vmatprep.subr.bf16.mxu0 0
    %963 = vmatpush1.bf16.msra.mxu0 0
    %964 = vmatprep.subr.bf16.mxu0 0
    %965 = vmatpush1.bf16.msra.mxu0 0
    %966 = vmatprep.subr.bf16.mxu0 0
    %967 = vmatpush1.bf16.msra.mxu0 0
    %968 = vmatprep.subr.bf16.mxu0 0
    %969 = vmatpush1.bf16.msra.mxu0 0
    %970 = vmatprep.mubr.bf16.mxu0 0
    %971 = vmatmul.mubr.bf16.gmra.mrb[0].mxu0 %v841
    %v972 = vpop.f32.mrb[0].mxu0
    %v973 = vadd.f32 0.0, %v972
    %v974 = vpop.f32.mrb[0].mxu0
    %v975 = vadd.f32 0.0, %v974
    %v976 = vpop.f32.mrb[0].mxu0
    %v977 = vadd.f32 0.0, %v976
    %v978 = vpop.f32.mrb[0].mxu0
    %v979 = vadd.f32 0.0, %v978
    %980 = vdwg.mxu0
    %v997 = vunpack.c.l.b16 %v605
    %v998 = vunpack.c.h.b16 %v605
    %v999 = vunpack.c.l.b16 %v606
    %v1000 = vunpack.c.h.b16 %v606
    %v1001 = vunpack.c.l.b16 %v607
    %v1002 = vunpack.c.h.b16 %v607
    %v1003 = vunpack.c.l.b16 %v608
    %v1004 = vunpack.c.h.b16 %v608
    %v1005 = vunpack.c.l.b16 %v609
    %v1006 = vunpack.c.h.b16 %v609
    %v1007 = vunpack.c.l.b16 %v610
    %v1008 = vunpack.c.h.b16 %v610
    %v1009 = vunpack.c.l.b16 %v611
    %v1010 = vunpack.c.h.b16 %v611
    %v1011 = vunpack.c.l.b16 %v612
    %v1012 = vunpack.c.h.b16 %v612
    %v1013 = vunpack.c.l.b16 %v613
    %v1014 = vunpack.c.h.b16 %v613
    %v1015 = vunpack.c.l.b16 %v614
    %v1016 = vunpack.c.h.b16 %v614
    %v1017 = vunpack.c.l.b16 %v615
    %v1018 = vunpack.c.h.b16 %v615
    %v1019 = vunpack.c.l.b16 %v616
    %v1020 = vunpack.c.h.b16 %v616
    %v1021 = vunpack.c.l.b16 %v617
    %v1022 = vunpack.c.h.b16 %v617
    %v1023 = vunpack.c.l.b16 %v618
    %v1024 = vunpack.c.h.b16 %v618
    %v1025 = vunpack.c.l.b16 %v619
    %v1026 = vunpack.c.h.b16 %v619
    %v1027 = vunpack.c.l.b16 %v620
    %v1028 = vunpack.c.h.b16 %v620
    %v1029 = vpack.c.b16 %v999, %v997
    %v1030 = vpack.c.b16 %v1000, %v998
    %v1031 = vpack.c.b16 %v1003, %v1001
    %v1032 = vpack.c.b16 %v1004, %v1002
    %v1033 = vpack.c.b16 %v1007, %v1005
    %v1034 = vpack.c.b16 %v1008, %v1006
    %v1035 = vpack.c.b16 %v1011, %v1009
    %v1036 = vpack.c.b16 %v1012, %v1010
    %v1037 = vpack.c.b16 %v1015, %v1013
    %v1038 = vpack.c.b16 %v1016, %v1014
    %v1039 = vpack.c.b16 %v1019, %v1017
    %v1040 = vpack.c.b16 %v1020, %v1018
    %v1041 = vpack.c.b16 %v1023, %v1021
    %v1042 = vpack.c.b16 %v1024, %v1022
    %v1043 = vpack.c.b16 %v1027, %v1025
    %v1044 = vpack.c.b16 %v1028, %v1026
    %1061 = vmatprep.subr.bf16.mxu0 %v1030
    %1062 = vmatpush1.bf16.msra.mxu0 %v1029
    %1063 = vmatprep.subr.bf16.mxu0 %v1032
    %1064 = vmatpush1.bf16.msra.mxu0 %v1031
    %1065 = vmatprep.subr.bf16.mxu0 %v1034
    %1066 = vmatpush1.bf16.msra.mxu0 %v1033
    %1067 = vmatprep.subr.bf16.mxu0 %v1036
    %1068 = vmatpush1.bf16.msra.mxu0 %v1035
    %1069 = vmatprep.subr.bf16.mxu0 %v1038
    %1070 = vmatpush1.bf16.msra.mxu0 %v1037
    %1071 = vmatprep.subr.bf16.mxu0 %v1040
    %1072 = vmatpush1.bf16.msra.mxu0 %v1039
    %1073 = vmatprep.subr.bf16.mxu0 %v1042
    %1074 = vmatpush1.bf16.msra.mxu0 %v1041
    %1075 = vmatprep.subr.bf16.mxu0 %v1044
    %1076 = vmatpush1.bf16.msra.mxu0 %v1043
    %1077 = vmatprep.subr.bf16.mxu0 0
    %1078 = vmatpush1.bf16.msra.mxu0 0
    %1079 = vmatprep.subr.bf16.mxu0 0
    %1080 = vmatpush1.bf16.msra.mxu0 0
    %1081 = vmatprep.subr.bf16.mxu0 0
    %1082 = vmatpush1.bf16.msra.mxu0 0
    %1083 = vmatprep.subr.bf16.mxu0 0
    %1084 = vmatpush1.bf16.msra.mxu0 0
    %1085 = vmatprep.subr.bf16.mxu0 0
    %1086 = vmatpush1.bf16.msra.mxu0 0
    %1087 = vmatprep.subr.bf16.mxu0 0
    %1088 = vmatpush1.bf16.msra.mxu0 0
    %1089 = vmatprep.subr.bf16.mxu0 0
    %1090 = vmatpush1.bf16.msra.mxu0 0
    %1091 = vmatprep.subr.bf16.mxu0 0
    %1092 = vmatpush1.bf16.msra.mxu0 0
    %1093 = vmatprep.mubr.bf16.mxu0 0
    %1094 = vmatmul.mubr.bf16.gmra.mrb[0].mxu0 %v604
    %v1095 = vpop.f32.mrb[0].mxu0
    %v1096 = vadd.f32 %v973, %v1095
    %v1097 = vpop.f32.mrb[0].mxu0
    %v1098 = vadd.f32 %v975, %v1097
    %v1099 = vpop.f32.mrb[0].mxu0
    %v1100 = vadd.f32 %v977, %v1099
    %v1101 = vpop.f32.mrb[0].mxu0
    %v1102 = vadd.f32 %v979, %v1101
    %1103 = vdwg.mxu0
    %v1104 = vld [vmem:[%s6] sm:$0x3]
    %v1106 = vlaneseq
    %v1107 = vshrl.u32 %v1106, 7
    %v1108 = vsub.s32 0, %v1107
    %v1109 = vrot.slane %v1104, %v1108
    %v1110 = vlaneseq
    %v1111 = vshrl.u32 %v1110, 7
    %v1112 = vsub.s32 1, %v1111
    %v1113 = vrot.slane %v1104, %v1112
    %v1116 = vadd.f32 %v1096, %v1109
    %v1117 = vadd.f32 %v1098, %v1113
    %v1118 = vadd.f32 %v1100, %v1109
    %v1119 = vadd.f32 %v1102, %v1113
    %1120 = vst.msk [vmem:[#allocation13] sm:$0xff] %vm224, %v1116
    %1121 = vst.msk [vmem:[#allocation13 + $0x8] sm:$0xff] %vm224, %v1118
    %v1122 = vld [vmem:[%s7] sm:$0xf]
    %v1123 = vld [vmem:[%s7 + $0x4] sm:$0xf]
    %v1124 = vld [vmem:[%s7 + $0x8] sm:$0xf]
    %v1125 = vld [vmem:[%s7 + $0xc] sm:$0xf]
    %v1130 = vunpack.c.l.b16 %v1122
    %v1131 = vunpack.c.l.b16 %v1123
    %v1132 = vunpack.c.l.b16 %v1124
    %v1133 = vunpack.c.l.b16 %v1125
    %v1134 = vpack.c.b16 %v1131, %v1130
    %v1135 = vpack.c.b16 %v1133, %v1132
    %v1139 = vsel %vm224, 0, 0
    %1141 = vmatprep.subr.bf16.mxu0 0
    %1142 = vmatpush1.bf16.msra.mxu0 %v1134
    %1143 = vmatprep.subr.bf16.mxu0 0
    %1144 = vmatpush1.bf16.msra.mxu0 %v1135
    %1145 = vmatprep.subr.bf16.mxu0 0
    %1146 = vmatpush1.bf16.msra.mxu0 0
    %1147 = vmatprep.subr.bf16.mxu0 0
    %1148 = vmatpush1.bf16.msra.mxu0 0
    %1149 = vmatprep.subr.bf16.mxu0 0
    %1150 = vmatpush1.bf16.msra.mxu0 0
    %1151 = vmatprep.subr.bf16.mxu0 0
    %1152 = vmatpush1.bf16.msra.mxu0 0
    %1153 = vmatprep.subr.bf16.mxu0 0
    %1154 = vmatpush1.bf16.msra.mxu0 0
    %1155 = vmatprep.subr.bf16.mxu0 0
    %1156 = vmatpush1.bf16.msra.mxu0 0
    %1157 = vmatprep.subr.bf16.mxu0 0
    %1158 = vmatpush1.bf16.msra.mxu0 0
    %1159 = vmatprep.subr.bf16.mxu0 0
    %1160 = vmatpush1.bf16.msra.mxu0 0
    %1161 = vmatprep.subr.bf16.mxu0 0
    %1162 = vmatpush1.bf16.msra.mxu0 0
    %1163 = vmatprep.subr.bf16.mxu0 0
    %1164 = vmatpush1.bf16.msra.mxu0 0
    %1165 = vmatprep.subr.bf16.mxu0 0
    %1166 = vmatpush1.bf16.msra.mxu0 0
    %1167 = vmatprep.subr.bf16.mxu0 0
    %1168 = vmatpush1.bf16.msra.mxu0 0
    %1169 = vmatprep.subr.bf16.mxu0 0
    %1170 = vmatpush1.bf16.msra.mxu0 0
    %1171 = vmatprep.subr.bf16.mxu0 0
    %1172 = vmatpush1.bf16.msra.mxu0 0
    %1173 = vmatprep.mubr.bf16.mxu0 0
    %1174 = vmatmul.mubr.bf16.gmra.mrb[0].mxu0 %v1139
    %v1175 = vpop.f32.mrb[0].mxu0
    %v1176 = vadd.f32 0.0, %v1175
    %v1177 = vpop.f32.mrb[0].mxu0
    %v1178 = vpop.f32.mrb[0].mxu0
    %v1179 = vpop.f32.mrb[0].mxu0
    %1180 = vdwg.mxu0
    %v1182 = vrot.slane %v1176, 1
    %v1185 = vadd.f32 %v1117, %v1176
    %v1186 = vadd.f32 %v1119, %v1182
    %v1187 = vxor.u32 %v1185, 2147483648
    %v1188 = vxor.u32 %v1186, 2147483648
    %v1189 = vmul.f32 %v1187, 1.442695
    %v1190 = vpow.pop %v1189
    %v1191 = vmul.f32 %v1188, 1.442695
    %v1192 = vpow.pop %v1191
    %v1193 = vadd.f32 %v1190, 1.0
    %v1194 = vadd.f32 %v1192, 1.0
    %v1195 = vrcp.pop %v1193
    %v1196 = vmul.f32 1.0, %v1195
    %v1197 = vrcp.pop %v1194
    %v1198 = vmul.f32 1.0, %v1197
    %v1199 = vtanh.pop %v1185
    %v1200 = vtanh.pop %v1186
    %v1201 = vmul.f32 %v1196, 0.0
    %v1202 = vmul.f32 %v1198, 0.0
    %1205 = vrot.lane.b32.xlu0 %v1199, 64
    %v1206 = vpop.permute.xlu0 %1205
    %1207 = vrot.lane.b32.xlu0 %v1200, 64
    %v1208 = vpop.permute.xlu0 %1207
    %v1211 = vmul.f32 %v1196, %v1206
    %v1212 = vmul.f32 %v1198, %v1208
    %1215 = vrot.lane.b32.xlu0 %v1211, 32
    %v1216 = vpop.permute.xlu0 %1215
    %1217 = vrot.lane.b32.xlu0 %v1212, 32
    %v1218 = vpop.permute.xlu0 %1217
    %v1221 = vadd.f32 %v1201, %v1216
    %v1222 = vadd.f32 %v1202, %v1218
    %v1223 = vtanh.pop %v1221
    %v1224 = vtanh.pop %v1222
    %1227 = vrot.lane.b32.xlu0 %v1223, 64
    %v1228 = vpop.permute.xlu0 %1227
    %1229 = vrot.lane.b32.xlu0 %v1224, 64
    %v1230 = vpop.permute.xlu0 %1229
    %v1233 = vmul.f32 %v1196, %v1228
    %v1234 = vmul.f32 %v1198, %v1230
    %1237 = vrot.lane.b32.xlu0 %v1233, 32
    %v1238 = vpop.permute.xlu0 %1237
    %1239 = vrot.lane.b32.xlu0 %v1234, 32
    %v1240 = vpop.permute.xlu0 %1239
    %vm1243 = vcmask 253952
    %1244 = vst.msk [vmem:[#allocation2] sm:$0x1] %vm1243, %v1238
    %1245 = vst.msk [vmem:[#allocation2 + $0x8] sm:$0x1] %vm1243, %v1240
    %v1246 = vpack.c.bf16 %v1233, %v1233
    %v1247 = vpack.c.bf16 %v1234, %v1234
    %v1250 = vunpack.c.l.b16 %v1246
    %v1251 = vunpack.c.l.b16 %v1247
    %v1252 = vrot.slane %v1251, 7
    %vm1253 = vcmask 1041409
    %v1254 = vsel %vm1253, %v1252, %v1250
    %v1255 = vpack.c.b16 %v1254, %v1254
    %1256 = vrot.lane.b32.xlu0 %v1255, 32
    %v1257 = vpop.permute.xlu0 %1256
    %v1259 = vsel %vm224, %v1257, 0
    %1261 = vmatprep.subr.bf16.mxu0 0
    %1262 = vmatpush1.bf16.msra.mxu0 %v1134
    %1263 = vmatprep.subr.bf16.mxu0 0
    %1264 = vmatpush1.bf16.msra.mxu0 %v1135
    %1265 = vmatprep.subr.bf16.mxu0 0
    %1266 = vmatpush1.bf16.msra.mxu0 0
    %1267 = vmatprep.subr.bf16.mxu0 0
    %1268 = vmatpush1.bf16.msra.mxu0 0
    %1269 = vmatprep.subr.bf16.mxu0 0
    %1270 = vmatpush1.bf16.msra.mxu0 0
    %1271 = vmatprep.subr.bf16.mxu0 0
    %1272 = vmatpush1.bf16.msra.mxu0 0
    %1273 = vmatprep.subr.bf16.mxu0 0
    %1274 = vmatpush1.bf16.msra.mxu0 0
    %1275 = vmatprep.subr.bf16.mxu0 0
    %1276 = vmatpush1.bf16.msra.mxu0 0
    %1277 = vmatprep.subr.bf16.mxu0 0
    %1278 = vmatpush1.bf16.msra.mxu0 0
    %1279 = vmatprep.subr.bf16.mxu0 0
    %1280 = vmatpush1.bf16.msra.mxu0 0
    %1281 = vmatprep.subr.bf16.mxu0 0
    %1282 = vmatpush1.bf16.msra.mxu0 0
    %1283 = vmatprep.subr.bf16.mxu0 0
    %1284 = vmatpush1.bf16.msra.mxu0 0
    %1285 = vmatprep.subr.bf16.mxu0 0
    %1286 = vmatpush1.bf16.msra.mxu0 0
    %1287 = vmatprep.subr.bf16.mxu0 0
    %1288 = vmatpush1.bf16.msra.mxu0 0
    %1289 = vmatprep.subr.bf16.mxu0 0
    %1290 = vmatpush1.bf16.msra.mxu0 0
    %1291 = vmatprep.subr.bf16.mxu0 0
    %1292 = vmatpush1.bf16.msra.mxu0 0
    %1293 = vmatprep.mubr.bf16.mxu0 0
    %1294 = vmatmul.mubr.bf16.gmra.mrb[0].mxu0 %v1259
    %v1295 = vpop.f32.mrb[0].mxu0
    %v1296 = vadd.f32 0.0, %v1295
    %v1297 = vpop.f32.mrb[0].mxu0
    %v1298 = vpop.f32.mrb[0].mxu0
    %v1299 = vpop.f32.mrb[0].mxu0
    %1300 = vdwg.mxu0
    %v1302 = vrot.slane %v1296, 7
    %v1305 = vadd.f32 %v1117, %v1302
    %v1306 = vadd.f32 %v1119, %v1296
    %v1307 = vxor.u32 %v1305, 2147483648
    %v1308 = vxor.u32 %v1306, 2147483648
    %v1309 = vmul.f32 %v1307, 1.442695
    %v1310 = vpow.pop %v1309
    %v1311 = vmul.f32 %v1308, 1.442695
    %v1312 = vpow.pop %v1311
    %v1313 = vadd.f32 %v1310, 1.0
    %v1314 = vadd.f32 %v1312, 1.0
    %v1315 = vrcp.pop %v1313
    %v1316 = vmul.f32 1.0, %v1315
    %v1317 = vrcp.pop %v1314
    %v1318 = vmul.f32 1.0, %v1317
    %v1319 = vtanh.pop %v1305
    %v1320 = vtanh.pop %v1306
    %v1323 = vrot.slane %v1221, 7
    %v1324 = vrot.slane %v1222, 7
    %v1327 = vmul.f32 %v1316, %v1323
    %v1328 = vmul.f32 %v1318, %v1324
    %1331 = vrot.lane.b32.xlu0 %v1319, 64
    %v1332 = vpop.permute.xlu0 %1331
    %1333 = vrot.lane.b32.xlu0 %v1320, 64
    %v1334 = vpop.permute.xlu0 %1333
    %v1337 = vmul.f32 %v1316, %v1332
    %v1338 = vmul.f32 %v1318, %v1334
    %1341 = vrot.lane.b32.xlu0 %v1337, 32
    %v1342 = vpop.permute.xlu0 %1341
    %1343 = vrot.lane.b32.xlu0 %v1338, 32
    %v1344 = vpop.permute.xlu0 %1343
    %v1347 = vadd.f32 %v1327, %v1342
    %v1348 = vadd.f32 %v1328, %v1344
    %v1349 = vtanh.pop %v1347
    %v1350 = vtanh.pop %v1348
    %1353 = vrot.lane.b32.xlu0 %v1349, 64
    %v1354 = vpop.permute.xlu0 %1353
    %1355 = vrot.lane.b32.xlu0 %v1350, 64
    %v1356 = vpop.permute.xlu0 %1355
    %v1359 = vmul.f32 %v1316, %v1354
    %v1360 = vmul.f32 %v1318, %v1356
    %1363 = vrot.lane.b32.xlu0 %v1359, 32
    %v1364 = vpop.permute.xlu0 %1363
    %1365 = vrot.lane.b32.xlu0 %v1360, 32
    %v1366 = vpop.permute.xlu0 %1365
    %vm1369 = vcmask 254977
    %1370 = vst.msk [vmem:[#allocation2] sm:$0x2] %vm1369, %v1364
    %1371 = vst.msk [vmem:[#allocation2 + $0x8] sm:$0x2] %vm1369, %v1366
    %v1372 = vpack.c.bf16 %v1359, %v1359
    %v1373 = vpack.c.bf16 %v1360, %v1360
    %v1376 = vunpack.c.l.b16 %v1372
    %v1377 = vunpack.c.l.b16 %v1373
    %v1378 = vrot.slane %v1376, 1
    %v1379 = vsel %vm1253, %v1377, %v1378
    %v1380 = vpack.c.b16 %v1379, %v1379
    %1381 = vrot.lane.b32.xlu0 %v1380, 32
    %v1382 = vpop.permute.xlu0 %1381
    %v1384 = vsel %vm224, %v1382, 0
    %1386 = vmatprep.subr.bf16.mxu0 0
    %1387 = vmatpush1.bf16.msra.mxu0 %v1134
    %1388 = vmatprep.subr.bf16.mxu0 0
    %1389 = vmatpush1.bf16.msra.mxu0 %v1135
    %1390 = vmatprep.subr.bf16.mxu0 0
    %1391 = vmatpush1.bf16.msra.mxu0 0
    %1392 = vmatprep.subr.bf16.mxu0 0
    %1393 = vmatpush1.bf16.msra.mxu0 0
    %1394 = vmatprep.subr.bf16.mxu0 0
    %1395 = vmatpush1.bf16.msra.mxu0 0
    %1396 = vmatprep.subr.bf16.mxu0 0
    %1397 = vmatpush1.bf16.msra.mxu0 0
    %1398 = vmatprep.subr.bf16.mxu0 0
    %1399 = vmatpush1.bf16.msra.mxu0 0
    %1400 = vmatprep.subr.bf16.mxu0 0
    %1401 = vmatpush1.bf16.msra.mxu0 0
    %1402 = vmatprep.subr.bf16.mxu0 0
    %1403 = vmatpush1.bf16.msra.mxu0 0
    %1404 = vmatprep.subr.bf16.mxu0 0
    %1405 = vmatpush1.bf16.msra.mxu0 0
    %1406 = vmatprep.subr.bf16.mxu0 0
    %1407 = vmatpush1.bf16.msra.mxu0 0
    %1408 = vmatprep.subr.bf16.mxu0 0
    %1409 = vmatpush1.bf16.msra.mxu0 0
    %1410 = vmatprep.subr.bf16.mxu0 0
    %1411 = vmatpush1.bf16.msra.mxu0 0
    %1412 = vmatprep.subr.bf16.mxu0 0
    %1413 = vmatpush1.bf16.msra.mxu0 0
    %1414 = vmatprep.subr.bf16.mxu0 0
    %1415 = vmatpush1.bf16.msra.mxu0 0
    %1416 = vmatprep.subr.bf16.mxu0 0
    %1417 = vmatpush1.bf16.msra.mxu0 0
    %1418 = vmatprep.mubr.bf16.mxu0 0
    %1419 = vmatmul.mubr.bf16.gmra.mrb[0].mxu0 %v1384
    %v1420 = vpop.f32.mrb[0].mxu0
    %v1421 = vadd.f32 0.0, %v1420
    %v1422 = vpop.f32.mrb[0].mxu0
    %v1423 = vpop.f32.mrb[0].mxu0
    %v1424 = vpop.f32.mrb[0].mxu0
    %1425 = vdwg.mxu0
    %v1427 = vrot.slane %v1421, 6
    %v1428 = vrot.slane %v1421, 7
    %v1431 = vadd.f32 %v1117, %v1427
    %v1432 = vadd.f32 %v1119, %v1428
    %v1433 = vxor.u32 %v1431, 2147483648
    %v1434 = vxor.u32 %v1432, 2147483648
    %v1435 = vmul.f32 %v1433, 1.442695
    %v1436 = vpow.pop %v1435
    %v1437 = vmul.f32 %v1434, 1.442695
    %v1438 = vpow.pop %v1437
    %v1439 = vadd.f32 %v1436, 1.0
    %v1440 = vadd.f32 %v1438, 1.0
    %v1441 = vrcp.pop %v1439
    %v1442 = vmul.f32 1.0, %v1441
    %v1443 = vrcp.pop %v1440
    %v1444 = vmul.f32 1.0, %v1443
    %v1445 = vtanh.pop %v1431
    %v1446 = vtanh.pop %v1432
    %v1449 = vrot.slane %v1347, 7
    %v1450 = vrot.slane %v1348, 7
    %v1453 = vmul.f32 %v1442, %v1449
    %v1454 = vmul.f32 %v1444, %v1450
    %1457 = vrot.lane.b32.xlu0 %v1445, 64
    %v1458 = vpop.permute.xlu0 %1457
    %1459 = vrot.lane.b32.xlu0 %v1446, 64
    %v1460 = vpop.permute.xlu0 %1459
    %v1463 = vmul.f32 %v1442, %v1458
    %v1464 = vmul.f32 %v1444, %v1460
    %1467 = vrot.lane.b32.xlu0 %v1463, 32
    %v1468 = vpop.permute.xlu0 %1467
    %1469 = vrot.lane.b32.xlu0 %v1464, 32
    %v1470 = vpop.permute.xlu0 %1469
    %v1473 = vadd.f32 %v1453, %v1468
    %v1474 = vadd.f32 %v1454, %v1470
    %v1475 = vtanh.pop %v1473
    %v1476 = vtanh.pop %v1474
    %1479 = vrot.lane.b32.xlu0 %v1475, 64
    %v1480 = vpop.permute.xlu0 %1479
    %1481 = vrot.lane.b32.xlu0 %v1476, 64
    %v1482 = vpop.permute.xlu0 %1481
    %v1485 = vmul.f32 %v1442, %v1480
    %v1486 = vmul.f32 %v1444, %v1482
    %1489 = vrot.lane.b32.xlu0 %v1485, 32
    %v1490 = vpop.permute.xlu0 %1489
    %1491 = vrot.lane.b32.xlu0 %v1486, 32
    %v1492 = vpop.permute.xlu0 %1491
    %vm1495 = vcmask 256002
    %1496 = vst.msk [vmem:[#allocation2] sm:$0x4] %vm1495, %v1490
    %1497 = vst.msk [vmem:[#allocation2 + $0x8] sm:$0x4] %vm1495, %v1492
    %v1498 = vpack.c.bf16 %v1485, %v1485
    %v1499 = vpack.c.bf16 %v1486, %v1486
    %v1502 = vunpack.c.l.b16 %v1498
    %v1503 = vunpack.c.l.b16 %v1499
    %v1504 = vrot.slane %v1502, 2
    %v1505 = vrot.slane %v1503, 1
    %v1506 = vsel %vm1253, %v1505, %v1504
    %v1507 = vpack.c.b16 %v1506, %v1506
    %1508 = vrot.lane.b32.xlu0 %v1507, 32
    %v1509 = vpop.permute.xlu0 %1508
    %v1511 = vsel %vm224, %v1509, 0
    %1513 = vmatprep.subr.bf16.mxu0 0
    %1514 = vmatpush1.bf16.msra.mxu0 %v1134
    %1515 = vmatprep.subr.bf16.mxu0 0
    %1516 = vmatpush1.bf16.msra.mxu0 %v1135
    %1517 = vmatprep.subr.bf16.mxu0 0
    %1518 = vmatpush1.bf16.msra.mxu0 0
    %1519 = vmatprep.subr.bf16.mxu0 0
    %1520 = vmatpush1.bf16.msra.mxu0 0
    %1521 = vmatprep.subr.bf16.mxu0 0
    %1522 = vmatpush1.bf16.msra.mxu0 0
    %1523 = vmatprep.subr.bf16.mxu0 0
    %1524 = vmatpush1.bf16.msra.mxu0 0
    %1525 = vmatprep.subr.bf16.mxu0 0
    %1526 = vmatpush1.bf16.msra.mxu0 0
    %1527 = vmatprep.subr.bf16.mxu0 0
    %1528 = vmatpush1.bf16.msra.mxu0 0
    %1529 = vmatprep.subr.bf16.mxu0 0
    %1530 = vmatpush1.bf16.msra.mxu0 0
    %1531 = vmatprep.subr.bf16.mxu0 0
    %1532 = vmatpush1.bf16.msra.mxu0 0
    %1533 = vmatprep.subr.bf16.mxu0 0
    %1534 = vmatpush1.bf16.msra.mxu0 0
    %1535 = vmatprep.subr.bf16.mxu0 0
    %1536 = vmatpush1.bf16.msra.mxu0 0
    %1537 = vmatprep.subr.bf16.mxu0 0
    %1538 = vmatpush1.bf16.msra.mxu0 0
    %1539 = vmatprep.subr.bf16.mxu0 0
    %1540 = vmatpush1.bf16.msra.mxu0 0
    %1541 = vmatprep.subr.bf16.mxu0 0
    %1542 = vmatpush1.bf16.msra.mxu0 0
    %1543 = vmatprep.subr.bf16.mxu0 0
    %1544 = vmatpush1.bf16.msra.mxu0 0
    %1545 = vmatprep.mubr.bf16.mxu0 0
    %1546 = vmatmul.mubr.bf16.gmra.mrb[0].mxu0 %v1511
    %v1547 = vpop.f32.mrb[0].mxu0
    %v1548 = vadd.f32 0.0, %v1547
    %v1549 = vpop.f32.mrb[0].mxu0
    %v1550 = vpop.f32.mrb[0].mxu0
    %v1551 = vpop.f32.mrb[0].mxu0
    %1552 = vdwg.mxu0
    %v1554 = vrot.slane %v1548, 5
    %v1555 = vrot.slane %v1548, 6
    %v1558 = vadd.f32 %v1117, %v1554
    %v1559 = vadd.f32 %v1119, %v1555
    %v1560 = vxor.u32 %v1558, 2147483648
    %v1561 = vxor.u32 %v1559, 2147483648
    %v1562 = vmul.f32 %v1560, 1.442695
    %v1563 = vpow.pop %v1562
    %v1564 = vmul.f32 %v1561, 1.442695
    %v1565 = vpow.pop %v1564
    %v1566 = vadd.f32 %v1563, 1.0
    %v1567 = vadd.f32 %v1565, 1.0
    %v1568 = vrcp.pop %v1566
    %v1569 = vmul.f32 1.0, %v1568
    %v1570 = vrcp.pop %v1567
    %v1571 = vmul.f32 1.0, %v1570
    %v1572 = vtanh.pop %v1558
    %v1573 = vtanh.pop %v1559
    %v1576 = vrot.slane %v1473, 7
    %v1577 = vrot.slane %v1474, 7
    %v1580 = vmul.f32 %v1569, %v1576
    %v1581 = vmul.f32 %v1571, %v1577
    %1584 = vrot.lane.b32.xlu0 %v1572, 64
    %v1585 = vpop.permute.xlu0 %1584
    %1586 = vrot.lane.b32.xlu0 %v1573, 64
    %v1587 = vpop.permute.xlu0 %1586
    %v1590 = vmul.f32 %v1569, %v1585
    %v1591 = vmul.f32 %v1571, %v1587
    %1594 = vrot.lane.b32.xlu0 %v1590, 32
    %v1595 = vpop.permute.xlu0 %1594
    %1596 = vrot.lane.b32.xlu0 %v1591, 32
    %v1597 = vpop.permute.xlu0 %1596
    %v1600 = vadd.f32 %v1580, %v1595
    %v1601 = vadd.f32 %v1581, %v1597
    %v1602 = vtanh.pop %v1600
    %v1603 = vtanh.pop %v1601
    %1606 = vrot.lane.b32.xlu0 %v1602, 64
    %v1607 = vpop.permute.xlu0 %1606
    %1608 = vrot.lane.b32.xlu0 %v1603, 64
    %v1609 = vpop.permute.xlu0 %1608
    %v1612 = vmul.f32 %v1569, %v1607
    %v1613 = vmul.f32 %v1571, %v1609
    %1616 = vrot.lane.b32.xlu0 %v1612, 32
    %v1617 = vpop.permute.xlu0 %1616
    %1618 = vrot.lane.b32.xlu0 %v1613, 32
    %v1619 = vpop.permute.xlu0 %1618
    %vm1622 = vcmask 257027
    %1623 = vst.msk [vmem:[#allocation2] sm:$0x8] %vm1622, %v1617
    %1624 = vst.msk [vmem:[#allocation2 + $0x8] sm:$0x8] %vm1622, %v1619
    %v1625 = vpack.c.bf16 %v1612, %v1612
    %v1626 = vpack.c.bf16 %v1613, %v1613
    %v1629 = vunpack.c.l.b16 %v1625
    %v1630 = vunpack.c.l.b16 %v1626
    %v1631 = vrot.slane %v1629, 3
    %v1632 = vrot.slane %v1630, 2
    %v1633 = vsel %vm1253, %v1632, %v1631
    %v1634 = vpack.c.b16 %v1633, %v1633
    %1635 = vrot.lane.b32.xlu0 %v1634, 32
    %v1636 = vpop.permute.xlu0 %1635
    %v1638 = vsel %vm224, %v1636, 0
    %1640 = vmatprep.subr.bf16.mxu0 0
    %1641 = vmatpush1.bf16.msra.mxu0 %v1134
    %1642 = vmatprep.subr.bf16.mxu0 0
    %1643 = vmatpush1.bf16.msra.mxu0 %v1135
    %1644 = vmatprep.subr.bf16.mxu0 0
    %1645 = vmatpush1.bf16.msra.mxu0 0
    %1646 = vmatprep.subr.bf16.mxu0 0
    %1647 = vmatpush1.bf16.msra.mxu0 0
    %1648 = vmatprep.subr.bf16.mxu0 0
    %1649 = vmatpush1.bf16.msra.mxu0 0
    %1650 = vmatprep.subr.bf16.mxu0 0
    %1651 = vmatpush1.bf16.msra.mxu0 0
    %1652 = vmatprep.subr.bf16.mxu0 0
    %1653 = vmatpush1.bf16.msra.mxu0 0
    %1654 = vmatprep.subr.bf16.mxu0 0
    %1655 = vmatpush1.bf16.msra.mxu0 0
    %1656 = vmatprep.subr.bf16.mxu0 0
    %1657 = vmatpush1.bf16.msra.mxu0 0
    %1658 = vmatprep.subr.bf16.mxu0 0
    %1659 = vmatpush1.bf16.msra.mxu0 0
    %1660 = vmatprep.subr.bf16.mxu0 0
    %1661 = vmatpush1.bf16.msra.mxu0 0
    %1662 = vmatprep.subr.bf16.mxu0 0
    %1663 = vmatpush1.bf16.msra.mxu0 0
    %1664 = vmatprep.subr.bf16.mxu0 0
    %1665 = vmatpush1.bf16.msra.mxu0 0
    %1666 = vmatprep.subr.bf16.mxu0 0
    %1667 = vmatpush1.bf16.msra.mxu0 0
    %1668 = vmatprep.subr.bf16.mxu0 0
    %1669 = vmatpush1.bf16.msra.mxu0 0
    %1670 = vmatprep.subr.bf16.mxu0 0
    %1671 = vmatpush1.bf16.msra.mxu0 0
    %1672 = vmatprep.mubr.bf16.mxu0 0
    %1673 = vmatmul.mubr.bf16.gmra.mrb[0].mxu0 %v1638
    %v1674 = vpop.f32.mrb[0].mxu0
    %v1675 = vadd.f32 0.0, %v1674
    %v1676 = vpop.f32.mrb[0].mxu0
    %v1677 = vpop.f32.mrb[0].mxu0
    %v1678 = vpop.f32.mrb[0].mxu0
    %1679 = vdwg.mxu0
    %v1681 = vrot.slane %v1675, 4
    %v1682 = vrot.slane %v1675, 5
    %v1685 = vadd.f32 %v1117, %v1681
    %v1686 = vadd.f32 %v1119, %v1682
    %v1687 = vxor.u32 %v1685, 2147483648
    %v1688 = vxor.u32 %v1686, 2147483648
    %v1689 = vmul.f32 %v1687, 1.442695
    %v1690 = vpow.pop %v1689
    %v1691 = vmul.f32 %v1688, 1.442695
    %v1692 = vpow.pop %v1691
    %v1693 = vadd.f32 %v1690, 1.0
    %v1694 = vadd.f32 %v1692, 1.0
    %v1695 = vrcp.pop %v1693
    %v1696 = vmul.f32 1.0, %v1695
    %v1697 = vrcp.pop %v1694
    %v1698 = vmul.f32 1.0, %v1697
    %v1699 = vtanh.pop %v1685
    %v1700 = vtanh.pop %v1686
    %v1703 = vrot.slane %v1600, 7
    %v1704 = vrot.slane %v1601, 7
    %v1707 = vmul.f32 %v1696, %v1703
    %v1708 = vmul.f32 %v1698, %v1704
    %1711 = vrot.lane.b32.xlu0 %v1699, 64
    %v1712 = vpop.permute.xlu0 %1711
    %1713 = vrot.lane.b32.xlu0 %v1700, 64
    %v1714 = vpop.permute.xlu0 %1713
    %v1717 = vmul.f32 %v1696, %v1712
    %v1718 = vmul.f32 %v1698, %v1714
    %1721 = vrot.lane.b32.xlu0 %v1717, 32
    %v1722 = vpop.permute.xlu0 %1721
    %1723 = vrot.lane.b32.xlu0 %v1718, 32
    %v1724 = vpop.permute.xlu0 %1723
    %v1727 = vadd.f32 %v1707, %v1722
    %v1728 = vadd.f32 %v1708, %v1724
    %v1729 = vtanh.pop %v1727
    %v1730 = vtanh.pop %v1728
    %1733 = vrot.lane.b32.xlu0 %v1729, 64
    %v1734 = vpop.permute.xlu0 %1733
    %1735 = vrot.lane.b32.xlu0 %v1730, 64
    %v1736 = vpop.permute.xlu0 %1735
    %v1739 = vmul.f32 %v1696, %v1734
    %v1740 = vmul.f32 %v1698, %v1736
    %1743 = vrot.lane.b32.xlu0 %v1739, 32
    %v1744 = vpop.permute.xlu0 %1743
    %1745 = vrot.lane.b32.xlu0 %v1740, 32
    %v1746 = vpop.permute.xlu0 %1745
    %vm1749 = vcmask 258052
    %1750 = vst.msk [vmem:[#allocation2] sm:$0x10] %vm1749, %v1744
    %1751 = vst.msk [vmem:[#allocation2 + $0x8] sm:$0x10] %vm1749, %v1746
    %v1752 = vpack.c.bf16 %v1739, %v1739
    %v1753 = vpack.c.bf16 %v1740, %v1740
    %v1756 = vunpack.c.l.b16 %v1752
    %v1757 = vunpack.c.l.b16 %v1753
    %v1758 = vrot.slane %v1756, 4
    %v1759 = vrot.slane %v1757, 3
    %v1760 = vsel %vm1253, %v1759, %v1758
    %v1761 = vpack.c.b16 %v1760, %v1760
    %1762 = vrot.lane.b32.xlu0 %v1761, 32
    %v1763 = vpop.permute.xlu0 %1762
    %v1765 = vsel %vm224, %v1763, 0
    %1767 = vmatprep.subr.bf16.mxu0 0
    %1768 = vmatpush1.bf16.msra.mxu0 %v1134
    %1769 = vmatprep.subr.bf16.mxu0 0
    %1770 = vmatpush1.bf16.msra.mxu0 %v1135
    %1771 = vmatprep.subr.bf16.mxu0 0
    %1772 = vmatpush1.bf16.msra.mxu0 0
    %1773 = vmatprep.subr.bf16.mxu0 0
    %1774 = vmatpush1.bf16.msra.mxu0 0
    %1775 = vmatprep.subr.bf16.mxu0 0
    %1776 = vmatpush1.bf16.msra.mxu0 0
    %1777 = vmatprep.subr.bf16.mxu0 0
    %1778 = vmatpush1.bf16.msra.mxu0 0
    %1779 = vmatprep.subr.bf16.mxu0 0
    %1780 = vmatpush1.bf16.msra.mxu0 0
    %1781 = vmatprep.subr.bf16.mxu0 0
    %1782 = vmatpush1.bf16.msra.mxu0 0
    %1783 = vmatprep.subr.bf16.mxu0 0
    %1784 = vmatpush1.bf16.msra.mxu0 0
    %1785 = vmatprep.subr.bf16.mxu0 0
    %1786 = vmatpush1.bf16.msra.mxu0 0
    %1787 = vmatprep.subr.bf16.mxu0 0
    %1788 = vmatpush1.bf16.msra.mxu0 0
    %1789 = vmatprep.subr.bf16.mxu0 0
    %1790 = vmatpush1.bf16.msra.mxu0 0
    %1791 = vmatprep.subr.bf16.mxu0 0
    %1792 = vmatpush1.bf16.msra.mxu0 0
    %1793 = vmatprep.subr.bf16.mxu0 0
    %1794 = vmatpush1.bf16.msra.mxu0 0
    %1795 = vmatprep.subr.bf16.mxu0 0
    %1796 = vmatpush1.bf16.msra.mxu0 0
    %1797 = vmatprep.subr.bf16.mxu0 0
    %1798 = vmatpush1.bf16.msra.mxu0 0
    %1799 = vmatprep.mubr.bf16.mxu0 0
    %1800 = vmatmul.mubr.bf16.gmra.mrb[0].mxu0 %v1765
    %v1801 = vpop.f32.mrb[0].mxu0
    %v1802 = vadd.f32 0.0, %v1801
    %v1803 = vpop.f32.mrb[0].mxu0
    %v1804 = vpop.f32.mrb[0].mxu0
    %v1805 = vpop.f32.mrb[0].mxu0
    %1806 = vdwg.mxu0
    %v1808 = vrot.slane %v1802, 3
    %v1809 = vrot.slane %v1802, 4
    %v1812 = vadd.f32 %v1117, %v1808
    %v1813 = vadd.f32 %v1119, %v1809
    %v1814 = vxor.u32 %v1812, 2147483648
    %v1815 = vxor.u32 %v1813, 2147483648
    %v1816 = vmul.f32 %v1814, 1.442695
    %v1817 = vpow.pop %v1816
    %v1818 = vmul.f32 %v1815, 1.442695
    %v1819 = vpow.pop %v1818
    %v1820 = vadd.f32 %v1817, 1.0
    %v1821 = vadd.f32 %v1819, 1.0
    %v1822 = vrcp.pop %v1820
    %v1823 = vmul.f32 1.0, %v1822
    %v1824 = vrcp.pop %v1821
    %v1825 = vmul.f32 1.0, %v1824
    %v1826 = vtanh.pop %v1812
    %v1827 = vtanh.pop %v1813
    %v1830 = vrot.slane %v1727, 7
    %v1831 = vrot.slane %v1728, 7
    %v1834 = vmul.f32 %v1823, %v1830
    %v1835 = vmul.f32 %v1825, %v1831
    %1838 = vrot.lane.b32.xlu0 %v1826, 64
    %v1839 = vpop.permute.xlu0 %1838
    %1840 = vrot.lane.b32.xlu0 %v1827, 64
    %v1841 = vpop.permute.xlu0 %1840
    %v1844 = vmul.f32 %v1823, %v1839
    %v1845 = vmul.f32 %v1825, %v1841
    %1848 = vrot.lane.b32.xlu0 %v1844, 32
    %v1849 = vpop.permute.xlu0 %1848
    %1850 = vrot.lane.b32.xlu0 %v1845, 32
    %v1851 = vpop.permute.xlu0 %1850
    %v1854 = vadd.f32 %v1834, %v1849
    %v1855 = vadd.f32 %v1835, %v1851
    %v1856 = vtanh.pop %v1854
    %v1857 = vtanh.pop %v1855
    %1860 = vrot.lane.b32.xlu0 %v1856, 64
    %v1861 = vpop.permute.xlu0 %1860
    %1862 = vrot.lane.b32.xlu0 %v1857, 64
    %v1863 = vpop.permute.xlu0 %1862
    %v1866 = vmul.f32 %v1823, %v1861
    %v1867 = vmul.f32 %v1825, %v1863
    %1870 = vrot.lane.b32.xlu0 %v1866, 32
    %v1871 = vpop.permute.xlu0 %1870
    %1872 = vrot.lane.b32.xlu0 %v1867, 32
    %v1873 = vpop.permute.xlu0 %1872
    %vm1876 = vcmask 259077
    %1877 = vst.msk [vmem:[#allocation2] sm:$0x20] %vm1876, %v1871
    %1878 = vst.msk [vmem:[#allocation2 + $0x8] sm:$0x20] %vm1876, %v1873
    %v1879 = vpack.c.bf16 %v1866, %v1866
    %v1880 = vpack.c.bf16 %v1867, %v1867
    %v1883 = vunpack.c.l.b16 %v1879
    %v1884 = vunpack.c.l.b16 %v1880
    %v1885 = vrot.slane %v1883, 5
    %v1886 = vrot.slane %v1884, 4
    %v1887 = vsel %vm1253, %v1886, %v1885
    %v1888 = vpack.c.b16 %v1887, %v1887
    %1889 = vrot.lane.b32.xlu0 %v1888, 32
    %v1890 = vpop.permute.xlu0 %1889
    %v1892 = vsel %vm224, %v1890, 0
    %1894 = vmatprep.subr.bf16.mxu0 0
    %1895 = vmatpush1.bf16.msra.mxu0 %v1134
    %1896 = vmatprep.subr.bf16.mxu0 0
    %1897 = vmatpush1.bf16.msra.mxu0 %v1135
    %1898 = vmatprep.subr.bf16.mxu0 0
    %1899 = vmatpush1.bf16.msra.mxu0 0
    %1900 = vmatprep.subr.bf16.mxu0 0
    %1901 = vmatpush1.bf16.msra.mxu0 0
    %1902 = vmatprep.subr.bf16.mxu0 0
    %1903 = vmatpush1.bf16.msra.mxu0 0
    %1904 = vmatprep.subr.bf16.mxu0 0
    %1905 = vmatpush1.bf16.msra.mxu0 0
    %1906 = vmatprep.subr.bf16.mxu0 0
    %1907 = vmatpush1.bf16.msra.mxu0 0
    %1908 = vmatprep.subr.bf16.mxu0 0
    %1909 = vmatpush1.bf16.msra.mxu0 0
    %1910 = vmatprep.subr.bf16.mxu0 0
    %1911 = vmatpush1.bf16.msra.mxu0 0
    %1912 = vmatprep.subr.bf16.mxu0 0
    %1913 = vmatpush1.bf16.msra.mxu0 0
    %1914 = vmatprep.subr.bf16.mxu0 0
    %1915 = vmatpush1.bf16.msra.mxu0 0
    %1916 = vmatprep.subr.bf16.mxu0 0
    %1917 = vmatpush1.bf16.msra.mxu0 0
    %1918 = vmatprep.subr.bf16.mxu0 0
    %1919 = vmatpush1.bf16.msra.mxu0 0
    %1920 = vmatprep.subr.bf16.mxu0 0
    %1921 = vmatpush1.bf16.msra.mxu0 0
    %1922 = vmatprep.subr.bf16.mxu0 0
    %1923 = vmatpush1.bf16.msra.mxu0 0
    %1924 = vmatprep.subr.bf16.mxu0 0
    %1925 = vmatpush1.bf16.msra.mxu0 0
    %1926 = vmatprep.mubr.bf16.mxu0 0
    %1927 = vmatmul.mubr.bf16.gmra.mrb[0].mxu0 %v1892
    %v1928 = vpop.f32.mrb[0].mxu0
    %v1929 = vadd.f32 0.0, %v1928
    %v1930 = vpop.f32.mrb[0].mxu0
    %v1931 = vpop.f32.mrb[0].mxu0
    %v1932 = vpop.f32.mrb[0].mxu0
    %1933 = vdwg.mxu0
    %v1935 = vrot.slane %v1929, 2
    %v1936 = vrot.slane %v1929, 3
    %v1939 = vadd.f32 %v1117, %v1935
    %v1940 = vadd.f32 %v1119, %v1936
    %v1941 = vxor.u32 %v1939, 2147483648
    %v1942 = vxor.u32 %v1940, 2147483648
    %v1943 = vmul.f32 %v1941, 1.442695
    %v1944 = vpow.pop %v1943
    %v1945 = vmul.f32 %v1942, 1.442695
    %v1946 = vpow.pop %v1945
    %v1947 = vadd.f32 %v1944, 1.0
    %v1948 = vadd.f32 %v1946, 1.0
    %v1949 = vrcp.pop %v1947
    %v1950 = vmul.f32 1.0, %v1949
    %v1951 = vrcp.pop %v1948
    %v1952 = vmul.f32 1.0, %v1951
    %v1953 = vtanh.pop %v1939
    %v1954 = vtanh.pop %v1940
    %v1957 = vrot.slane %v1854, 7
    %v1958 = vrot.slane %v1855, 7
    %v1961 = vmul.f32 %v1950, %v1957
    %v1962 = vmul.f32 %v1952, %v1958
    %1965 = vrot.lane.b32.xlu0 %v1953, 64
    %v1966 = vpop.permute.xlu0 %1965
    %1967 = vrot.lane.b32.xlu0 %v1954, 64
    %v1968 = vpop.permute.xlu0 %1967
    %v1971 = vmul.f32 %v1950, %v1966
    %v1972 = vmul.f32 %v1952, %v1968
    %1975 = vrot.lane.b32.xlu0 %v1971, 32
    %v1976 = vpop.permute.xlu0 %1975
    %1977 = vrot.lane.b32.xlu0 %v1972, 32
    %v1978 = vpop.permute.xlu0 %1977
    %v1981 = vadd.f32 %v1961, %v1976
    %v1982 = vadd.f32 %v1962, %v1978
    %v1983 = vtanh.pop %v1981
    %v1984 = vtanh.pop %v1982
    %1987 = vrot.lane.b32.xlu0 %v1983, 64
    %v1988 = vpop.permute.xlu0 %1987
    %1989 = vrot.lane.b32.xlu0 %v1984, 64
    %v1990 = vpop.permute.xlu0 %1989
    %v1993 = vmul.f32 %v1950, %v1988
    %v1994 = vmul.f32 %v1952, %v1990
    %1997 = vrot.lane.b32.xlu0 %v1993, 32
    %v1998 = vpop.permute.xlu0 %1997
    %1999 = vrot.lane.b32.xlu0 %v1994, 32
    %v2000 = vpop.permute.xlu0 %1999
    %vm2003 = vcmask 260102
    %2004 = vst.msk [vmem:[#allocation2] sm:$0x40] %vm2003, %v1998
    %2005 = vst.msk [vmem:[#allocation2 + $0x8] sm:$0x40] %vm2003, %v2000
    %v2006 = vpack.c.bf16 %v1993, %v1993
    %v2007 = vpack.c.bf16 %v1994, %v1994
    %v2010 = vunpack.c.l.b16 %v2006
    %v2011 = vunpack.c.l.b16 %v2007
    %v2012 = vrot.slane %v2010, 6
    %v2013 = vrot.slane %v2011, 5
    %v2014 = vsel %vm1253, %v2013, %v2012
    %v2015 = vpack.c.b16 %v2014, %v2014
    %2016 = vrot.lane.b32.xlu0 %v2015, 32
    %v2017 = vpop.permute.xlu0 %2016
    %v2019 = vsel %vm224, %v2017, 0
    %2021 = vmatprep.subr.bf16.mxu0 0
    %2022 = vmatpush1.bf16.msra.mxu0 %v1134
    %2023 = vmatprep.subr.bf16.mxu0 0
    %2024 = vmatpush1.bf16.msra.mxu0 %v1135
    %2025 = vmatprep.subr.bf16.mxu0 0
    %2026 = vmatpush1.bf16.msra.mxu0 0
    %2027 = vmatprep.subr.bf16.mxu0 0
    %2028 = vmatpush1.bf16.msra.mxu0 0
    %2029 = vmatprep.subr.bf16.mxu0 0
    %2030 = vmatpush1.bf16.msra.mxu0 0
    %2031 = vmatprep.subr.bf16.mxu0 0
    %2032 = vmatpush1.bf16.msra.mxu0 0
    %2033 = vmatprep.subr.bf16.mxu0 0
    %2034 = vmatpush1.bf16.msra.mxu0 0
    %2035 = vmatprep.subr.bf16.mxu0 0
    %2036 = vmatpush1.bf16.msra.mxu0 0
    %2037 = vmatprep.subr.bf16.mxu0 0
    %2038 = vmatpush1.bf16.msra.mxu0 0
    %2039 = vmatprep.subr.bf16.mxu0 0
    %2040 = vmatpush1.bf16.msra.mxu0 0
    %2041 = vmatprep.subr.bf16.mxu0 0
    %2042 = vmatpush1.bf16.msra.mxu0 0
    %2043 = vmatprep.subr.bf16.mxu0 0
    %2044 = vmatpush1.bf16.msra.mxu0 0
    %2045 = vmatprep.subr.bf16.mxu0 0
    %2046 = vmatpush1.bf16.msra.mxu0 0
    %2047 = vmatprep.subr.bf16.mxu0 0
    %2048 = vmatpush1.bf16.msra.mxu0 0
    %2049 = vmatprep.subr.bf16.mxu0 0
    %2050 = vmatpush1.bf16.msra.mxu0 0
    %2051 = vmatprep.subr.bf16.mxu0 0
    %2052 = vmatpush1.bf16.msra.mxu0 0
    %2053 = vmatprep.mubr.bf16.mxu0 0
    %2054 = vmatmul.mubr.bf16.gmra.mrb[0].mxu0 %v2019
    %v2055 = vpop.f32.mrb[0].mxu0
    %v2056 = vadd.f32 0.0, %v2055
    %v2057 = vpop.f32.mrb[0].mxu0
    %v2058 = vpop.f32.mrb[0].mxu0
    %v2059 = vpop.f32.mrb[0].mxu0
    %2060 = vdwg.mxu0
    %v2062 = vrot.slane %v2056, 1
    %v2063 = vrot.slane %v2056, 2
    %v2066 = vadd.f32 %v1117, %v2062
    %v2067 = vadd.f32 %v1119, %v2063
    %v2068 = vxor.u32 %v2066, 2147483648
    %v2069 = vxor.u32 %v2067, 2147483648
    %v2070 = vmul.f32 %v2068, 1.442695
    %v2071 = vpow.pop %v2070
    %v2072 = vmul.f32 %v2069, 1.442695
    %v2073 = vpow.pop %v2072
    %v2074 = vadd.f32 %v2071, 1.0
    %v2075 = vadd.f32 %v2073, 1.0
    %v2076 = vrcp.pop %v2074
    %v2077 = vmul.f32 1.0, %v2076
    %v2078 = vrcp.pop %v2075
    %v2079 = vmul.f32 1.0, %v2078
    %v2080 = vtanh.pop %v2066
    %v2081 = vtanh.pop %v2067
    %v2084 = vrot.slane %v1981, 7
    %v2085 = vrot.slane %v1982, 7
    %v2088 = vmul.f32 %v2077, %v2084
    %v2089 = vmul.f32 %v2079, %v2085
    %2092 = vrot.lane.b32.xlu0 %v2080, 64
    %v2093 = vpop.permute.xlu0 %2092
    %2094 = vrot.lane.b32.xlu0 %v2081, 64
    %v2095 = vpop.permute.xlu0 %2094
    %v2098 = vmul.f32 %v2077, %v2093
    %v2099 = vmul.f32 %v2079, %v2095
    %2102 = vrot.lane.b32.xlu0 %v2098, 32
    %v2103 = vpop.permute.xlu0 %2102
    %2104 = vrot.lane.b32.xlu0 %v2099, 32
    %v2105 = vpop.permute.xlu0 %2104
    %v2108 = vadd.f32 %v2088, %v2103
    %v2109 = vadd.f32 %v2089, %v2105
    %v2110 = vtanh.pop %v2108
    %v2111 = vtanh.pop %v2109
    %2114 = vrot.lane.b32.xlu0 %v2110, 64
    %v2115 = vpop.permute.xlu0 %2114
    %2116 = vrot.lane.b32.xlu0 %v2111, 64
    %v2117 = vpop.permute.xlu0 %2116
    %v2120 = vmul.f32 %v2077, %v2115
    %v2121 = vmul.f32 %v2079, %v2117
    %2124 = vrot.lane.b32.xlu0 %v2120, 32
    %v2125 = vpop.permute.xlu0 %2124
    %2126 = vrot.lane.b32.xlu0 %v2121, 32
    %v2127 = vpop.permute.xlu0 %2126
    %vm2130 = vcmask 261127
    %2131 = vst.msk [vmem:[#allocation2] sm:$0x80] %vm2130, %v2125
    %2132 = vst.msk [vmem:[#allocation2 + $0x8] sm:$0x80] %vm2130, %v2127
    %v2133 = vld [vmem:[#allocation2] sm:$0xff]
    %v2134 = vld [vmem:[#allocation2 + $0x8] sm:$0xff]
    %v2135 = vpack.c.bf16 %v2134, %v2133
    %v2136 = vld [vmem:[%s8] sm:$0xf]
    %v2137 = vld [vmem:[%s8 + $0x4] sm:$0xf]
    %v2138 = vld [vmem:[%s8 + $0x8] sm:$0xf]
    %v2139 = vld [vmem:[%s8 + $0xc] sm:$0xf]
    %v2140 = vld [vmem:[%s9] sm:$0x1]
    %v2142 = vlaneseq
    %v2143 = vshrl.u32 %v2142, 7
    %v2144 = vsub.s32 0, %v2143
    %v2145 = vrot.slane %v2140, %v2144
    %v2151 = vunpack.c.l.b16 %v2136
    %v2152 = vunpack.c.l.b16 %v2137
    %v2153 = vunpack.c.l.b16 %v2138
    %v2154 = vunpack.c.l.b16 %v2139
    %v2155 = vpack.c.b16 %v2152, %v2151
    %v2156 = vpack.c.b16 %v2154, %v2153
    %v2160 = vsel %vm224, %v2135, 0
    %2162 = vmatprep.subr.bf16.mxu0 0
    %2163 = vmatpush1.bf16.msra.mxu0 %v2155
    %2164 = vmatprep.subr.bf16.mxu0 0
    %2165 = vmatpush1.bf16.msra.mxu0 %v2156
    %2166 = vmatprep.subr.bf16.mxu0 0
    %2167 = vmatpush1.bf16.msra.mxu0 0
    %2168 = vmatprep.subr.bf16.mxu0 0
    %2169 = vmatpush1.bf16.msra.mxu0 0
    %2170 = vmatprep.subr.bf16.mxu0 0
    %2171 = vmatpush1.bf16.msra.mxu0 0
    %2172 = vmatprep.subr.bf16.mxu0 0
    %2173 = vmatpush1.bf16.msra.mxu0 0
    %2174 = vmatprep.subr.bf16.mxu0 0
    %2175 = vmatpush1.bf16.msra.mxu0 0
    %2176 = vmatprep.subr.bf16.mxu0 0
    %2177 = vmatpush1.bf16.msra.mxu0 0
    %2178 = vmatprep.subr.bf16.mxu0 0
    %2179 = vmatpush1.bf16.msra.mxu0 0
    %2180 = vmatprep.subr.bf16.mxu0 0
    %2181 = vmatpush1.bf16.msra.mxu0 0
    %2182 = vmatprep.subr.bf16.mxu0 0
    %2183 = vmatpush1.bf16.msra.mxu0 0
    %2184 = vmatprep.subr.bf16.mxu0 0
    %2185 = vmatpush1.bf16.msra.mxu0 0
    %2186 = vmatprep.subr.bf16.mxu0 0
    %2187 = vmatpush1.bf16.msra.mxu0 0
    %2188 = vmatprep.subr.bf16.mxu0 0
    %2189 = vmatpush1.bf16.msra.mxu0 0
    %2190 = vmatprep.subr.bf16.mxu0 0
    %2191 = vmatpush1.bf16.msra.mxu0 0
    %2192 = vmatprep.subr.bf16.mxu0 0
    %2193 = vmatpush1.bf16.msra.mxu0 0
    %2194 = vmatprep.mubr.bf16.mxu0 0
    %2195 = vmatmul.mubr.bf16.gmra.mrb[0].mxu0 %v2160
    %v2196 = vpop.f32.mrb[0].mxu0
    %v2197 = vadd.f32 %v2145, %v2196
    %v2198 = vpop.f32.mrb[0].mxu0
    %v2199 = vpop.f32.mrb[0].mxu0
    %v2200 = vadd.f32 %v2145, %v2199
    %v2201 = vpop.f32.mrb[0].mxu0
    %2202 = vdwg.mxu0
    %vm2203 = vcmask 130048
    %2204 = vst.msk [vmem:[#allocation12] sm:$0xff] %vm2203, %v2197
    %2205 = vst.msk [vmem:[#allocation12 + $0x8] sm:$0xff] %vm2203, %v2200
    // Predicated region
    $region62: #{tpu_custom_call.1} parent=1 // pred_check
      _
    $region63: #{tpu_custom_call.1} parent=1 // pred_check_branch
      %2207 = sbr.rel (0) target = $region65
    $region64: #{tpu_custom_call.1} parent=1 // pred_region
      %s2209 = ssub.s32 256, 256
      %2210 = vsyncadd [#allocation5], %s2209
      %s2211 = sshll.u32 [#allocation12], 4
      %s2212 = int_to_ptr.vmem [resolvable:$true] %s2211
      %2217 = dma.vmem_to_hbm [thread:$0]  %s2212, 256, %s10, [#allocation5], 128, 128, 8
    $region65: #{tpu_custom_call.1} parent=1 // pred_fallthru
      _
    // Predicated region
    $region66: #{tpu_custom_call.1} parent=1 // pred_check
      _
    $region67: #{tpu_custom_call.1} parent=1 // pred_check_branch
      %2219 = sbr.rel (0) target = $region69
    $region68: #{tpu_custom_call.1} parent=1 // pred_region
      %s2221 = ssub.s32 256, 256
      %2222 = vsyncadd [#allocation14], %s2221
      %s2223 = sshll.u32 [#allocation13], 4
      %s2224 = int_to_ptr.vmem [resolvable:$true] %s2223
      %2229 = dma.vmem_to_hbm [thread:$0]  %s2224, 256, %s11, [#allocation14], 128, 128, 8
    $region69: #{tpu_custom_call.1} parent=1 // pred_fallthru
      _
    // Predicated region
    $region70: #{tpu_custom_call.1} parent=1 // pred_check
      _
    $region71: #{tpu_custom_call.1} parent=1 // pred_check_branch
      %2231 = sbr.rel (0) target = $region73
    $region72: #{tpu_custom_call.1} parent=1 // pred_region
      %2232 = dma.done [#allocation5], 256
    $region73: #{tpu_custom_call.1} parent=1 // pred_fallthru
      _
    // Predicated region
    $region74: #{tpu_custom_call.1} parent=1 // pred_check
      _
    $region75: #{tpu_custom_call.1} parent=1 // pred_check_branch
      %2234 = sbr.rel (0) target = $region77
    $region76: #{tpu_custom_call.1} parent=1 // pred_region
      %2235 = dma.done [#allocation14], 256
    $region77: #{tpu_custom_call.1} parent=1 // pred_fallthru
      _
    %2236 = vsyncpa [#allocation4], 1
    %2237 = vsyncpa [#allocation7], 1
    %2238 = vsyncpa [#allocation10], 1
    %2239 = vsyncpa [#allocation5], 1
    %2240 = vsyncpa [#allocation14], 1

</llo_original>
